<compile_context>
chip_gen: v5e
topology: v5e:2x2
jax: 0.10.0
libtpu: 0.0.40
codegen_flags: <defaults>
</compile_context>

<pallas_src>
import numpy as np
import jax
import jax.numpy as jnp
from jax import lax
from jax.experimental import pallas as pl
from jax.experimental.pallas import tpu as pltpu


# ----------------------------- fused kernel -----------------------------
def _make_fused_kernel(num_layers, S, Bp, H, C):
    G = 8 * H          # combined (both-direction) gate width
    H2 = 2 * H
    MXU_DT = jnp.bfloat16   # MXU operand dtype for the LSTM matmuls (f32 accumulation)

    def kernel(*refs):
        n_in = 1 + 3 * num_layers + 4
        x_ref = refs[0]
        layer_refs = [refs[1 + 3 * l: 4 + 3 * l] for l in range(num_layers)]
        wa_ref, ba_ref, wf_ref, bf_ref = refs[1 + 3 * num_layers: n_in]
        out_ref = refs[n_in]
        seq_refs = refs[n_in + 1:]

        # fwd-column masks over the combined gate / hidden axes (H-wide chunks alternate fwd/bwd)
        col_g = lax.broadcasted_iota(jnp.int32, (1, G), 1)
        is_fwd_g = (col_g % H2) < H
        col_h = lax.broadcasted_iota(jnp.int32, (1, H2), 1)
        is_fwd_h = col_h < H

        def time_reverse(v):
            # reverse the S time blocks of a time-major-flat (S*Bp, W) value (static slices only)
            return jnp.concatenate(
                [v[(S - 1 - t) * Bp:(S - t) * Bp, :] for t in range(S)], axis=0)

        # TODO(synk): inter-layer LSTM dropout and alpha_dropout are identity (inference mode).
        inp = x_ref[...]                                                     # (S*Bp, F_in), f32
        for l in range(num_layers):
            wih_ref, whh_ref, b_ref = layer_refs[l]
            seq_ref = seq_refs[l]

            # Hoisted input projection for ALL timesteps & both directions (one bf16 MXU matmul),
            # then a one-shot fwd/bwd time alignment so the recurrence below never selects.
            gx = jnp.dot(inp.astype(MXU_DT), wih_ref[...].astype(MXU_DT),
                         preferred_element_type=jnp.float32) + b_ref[...]    # (S*Bp, 8H) f32
            gx_sel = jnp.where(is_fwd_g, gx, time_reverse(gx))               # bwd cols use time S-1-t
            # TODO(synk): at realistic S*Bp / H, chunk gx over time (double-buffered VMEM scratch)
            #             so the (S*Bp, 8H) slab stays inside v7x's 64 MiB VMEM.

            whh = whh_ref[...].astype(MXU_DT)        # (2H, 8H) block-diagonal; cast hoisted
            # TODO(synk): for H >= 128 split the recurrent update into two (Bp,H)@(H,4H) dots
            #             instead of the block-diagonal form (structural zeros no longer free).
            h = jnp.zeros((Bp, H2), jnp.float32)                             # [h_fwd | h_bwd]
            c = jnp.zeros((Bp, H2), jnp.float32)
            # S=8 here -> keep the recurrence statically unrolled (LLO visibility, no vreg blowup).
            # TODO(synk): for S beyond ~16-32 switch to lax.fori_loop(..., unroll=4-8) with
            #             ref[pl.ds(pl.multiple_of(t*Bp, Bp), Bp), :] row slices.
            for t in range(S):
                rt = t * Bp
                gates = gx_sel[rt:rt + Bp, :] + jnp.dot(
                    h.astype(MXU_DT), whh, preferred_element_type=jnp.float32)
                sig = jax.nn.sigmoid(gates[:, 0:6 * H])   # [i_f,i_b,f_f,f_b,o_f,o_b]  (one EUP block)
                g_g = jnp.tanh(gates[:, 6 * H:])          # [g_f,g_b]                  (one EUP block)
                i_g = sig[:, 0:H2]
                f_g = sig[:, H2:2 * H2]
                o_g = sig[:, 2 * H2:3 * H2]
                c = f_g * c + i_g * g_g
                h = o_g * jnp.tanh(c)
                seq_ref[rt:rt + Bp, :] = h                # ONE full-width store per step
            # Post-loop fix-up (off the carry critical path): the bwd half of row-block t holds the
            # output for time S-1-t; swap it back into time order for the next layer / attention.
            Z = seq_ref[...]
            inp = jnp.where(is_fwd_h, Z, time_reverse(Z))                    # (S*Bp, 2H), time-ordered

        # ----- attention + classifier (vectorized over all timesteps, VMEM-resident) -----
        lo = inp                                                             # (S*Bp, 2H), row = t*Bp+b
        m = jnp.tanh(lo)
        s = jnp.dot(m, wa_ref[...],
                    preferred_element_type=jnp.float32) + ba_ref[0, 0]       # (S*Bp, 1)
        smax = jnp.max(s, axis=0, keepdims=True)                             # global max (stability)
        e = jnp.exp(s - smax)                                                # (S*Bp, 1)
        # 0/1 "sum over time per batch row" gather matrix: P[b, t*Bp + b] = 1.  One MXU dot replaces
        # the former ~3*S serialized (B, 1) softmax / accumulation ops.
        row_b = lax.broadcasted_iota(jnp.int32, (Bp, S * Bp), 0)
        col_j = lax.broadcasted_iota(jnp.int32, (Bp, S * Bp), 1)
        pmat = (col_j % Bp == row_b).astype(jnp.float32)
        # TODO(synk): at large S*Bp replace pmat with a chunked time reduction (pmat grows as S*Bp^2).
        r = jnp.dot(pmat, lo * e, preferred_element_type=jnp.float32)        # (Bp, 2H)
        denom = jnp.dot(pmat, e, preferred_element_type=jnp.float32)         # (Bp, 1)
        h_star = jnp.tanh(r * pl.reciprocal(denom, approx=True))
        out = jnp.dot(h_star, wf_ref[...],
                      preferred_element_type=jnp.float32) + bf_ref[...]
        out_ref[...] = out.astype(out_ref.dtype)

    return kernel


def attention_model_forward(x, params):
    """x: (B, S, input_size) -> (B, num_classes)."""
    B, S, F = x.shape
    layers = params["layers"]
    num_layers = len(layers)
    H = layers[0][1].shape[0] // 2          # whh is (2H, 8H)
    C = params["wf"].shape[1]

    # Pad batch to a multiple of 8 sublanes (zero rows; cropped from the output at the end).
    Bp = max(8, ((B + 7) // 8) * 8)
    # TODO(synk): for realistic batches round Bp toward 128 (MXU M tile; 128 also native on v5e) and
    #             add a "parallel" batch-chunk grid axis so v7x's second TensorCore is used; at the
    #             test shape (B=2 -> Bp=8) such a grid would have size 1.
    x_pad = jnp.pad(x.astype(jnp.float32), ((0, Bp - B), (0, 0), (0, 0)))
    x2d = jnp.transpose(x_pad, (1, 0, 2)).reshape(S * Bp, F)    # time-major flat rows: t*Bp + b

    inputs = [x2d]
    for (wih, whh, b) in layers:
        inputs += [wih, whh, b]
    inputs += [params["wa"], params["ba"], params["wf"], params["bf"]]

    vmem = pl.BlockSpec(memory_space=pltpu.MemorySpace.VMEM)
    smem = pl.BlockSpec(memory_space=pltpu.MemorySpace.SMEM)
    in_specs = [vmem] * (1 + 3 * num_layers) + [vmem, smem, vmem, vmem]
    # TODO(synk): for large weights, pass layer>0 weights with memory_space=pl.ANY and prefetch them
    #             via pltpu.make_async_copy while layer l-1's recurrence runs.

    # Scoped-VMEM budget from the actual footprint (inputs + weights + seq scratch + gx slabs).
    n_bytes = sum(int(a.size) * a.dtype.itemsize for a in inputs)
    n_bytes += num_layers * S * Bp * 2 * H * 4           # per-layer seq scratch
    n_bytes += 3 * S * Bp * 8 * H * 4                    # gx / gx_sel / gate temporaries
    vmem_limit = int(min(max(2 * n_bytes + (4 << 20), 32 << 20), 64 << 20))

    out = pl.pallas_call(
        _make_fused_kernel(num_layers, S, Bp, H, C),
        out_shape=jax.ShapeDtypeStruct((Bp, C), jnp.float32),
        in_specs=in_specs,
        out_specs=vmem,
        scratch_shapes=[pltpu.VMEM((S * Bp, 2 * H), jnp.float32)
                        for _ in range(num_layers)],
        compiler_params=pltpu.CompilerParams(vmem_limit_bytes=vmem_limit),
    )(*inputs)
    return out[:B]


# ----------------------------- parameters -----------------------------
def init_raw_params(key, input_size, hidden_size, num_layers, num_classes):
    """PyTorch-convention parameters: per layer/direction (w_ih, w_hh, b_ih, b_hh)."""
    H = hidden_size
    k_lstm = 1.0 / np.sqrt(H)
    k_lin = 1.0 / np.sqrt(2 * H)

    def u(k, shape, scale):
        return jax.random.uniform(k, shape, jnp.float32, -scale, scale)

    raw = {"lstm": []}
    for layer in range(num_layers):
        in_sz = input_size if layer == 0 else 2 * H
        dirs = []
        for _d in range(2):
            key, k1, k2, k3, k4 = jax.random.split(key, 5)
            dirs.append((u(k1, (4 * H, in_sz), k_lstm),
                         u(k2, (4 * H, H), k_lstm),
                         u(k3, (4 * H,), k_lstm),
                         u(k4, (4 * H,), k_lstm)))
        raw["lstm"].append(dirs)

    key, k1, k2, k3, k4 = jax.random.split(key, 5)
    raw["alpha_w"] = u(k1, (1, 2 * H), k_lin)
    raw["alpha_b"] = u(k2, (1,), k_lin)
    raw["fc_w"] = u(k3, (num_classes, 2 * H), k_lin)
    raw["fc_b"] = u(k4, (num_classes,), k_lin)
    return raw


def prep_params(raw, hidden_size):
    """Repack PyTorch-layout weights into the kernel's G8 / block-diagonal layout.

    Kernel gate-chunk order (each chunk H wide): [i_f,i_b,f_f,f_b,o_f,o_b,g_f,g_b]
    -> one sigmoid over the first 6H columns, one tanh over the last 2H.
    PyTorch packs gates as [i, f, g, o] along the 4H axis.
    """
    H = hidden_size
    zero_hh = jnp.zeros((H, H), jnp.float32)
    torch_gate = {"i": 0, "f": 1, "g": 2, "o": 3}
    kernel_order = ("i", "f", "o", "g")
    layers = []
    for (w_ih_f, w_hh_f, b_ih_f, b_hh_f), (w_ih_b, w_hh_b, b_ih_b, b_hh_b) in raw["lstm"]:
        bf, bb = b_ih_f + b_hh_f, b_ih_b + b_hh_b
        wih_cols, top, bot, b_chunks = [], [], [], []
        for gname in kernel_order:
            gi = torch_gate[gname]
            sl = slice(gi * H, (gi + 1) * H)
            wih_cols += [w_ih_f[sl].T, w_ih_b[sl].T]
            top += [w_hh_f[sl].T, zero_hh]
            bot += [zero_hh, w_hh_b[sl].T]
            b_chunks += [bf[sl], bb[sl]]
        wih = jnp.concatenate(wih_cols, axis=1)                              # (F_in, 8H)
        whh = jnp.concatenate([jnp.concatenate(top, axis=1),
                               jnp.concatenate(bot, axis=1)], axis=0)        # (2H, 8H) block-diag
        b = jnp.concatenate(b_chunks)[None, :]                               # (1, 8H)
        layers.append((wih, whh, b))
    return {"layers": layers,
            "wa": raw["alpha_w"].T,                                          # (2H, 1)
            "ba": raw["alpha_b"].reshape(1, 1),                              # (1, 1) -> SMEM
            "wf": raw["fc_w"].T,                                             # (2H, C)
            "bf": raw["fc_b"][None, :]}                                      # (1, C)


# ----------------------------- pure-JAX reference -----------------------------
def _reference_forward(x, raw):
    def run_dir(seq, w_ih, w_hh, b_ih, b_hh):
        B = seq.shape[1]
        H = w_hh.shape[1]
        wihT, whhT, b = w_ih.T, w_hh.T, (b_ih + b_hh)[None, :]

        def step(carry, x_t):
            h, c = carry
            gates = x_t @ wihT + h @ whhT + b
            i = jax.nn.sigmoid(gates[:, :H])
            f = jax.nn.sigmoid(gates[:, H:2 * H])
            g = jnp.tanh(gates[:, 2 * H:3 * H])
            o = jax.nn.sigmoid(gates[:, 3 * H:])
            c = f * c + i * g
            h = o * jnp.tanh(c)
            return (h, c), h

        init = (jnp.zeros((B, H), jnp.float32), jnp.zeros((B, H), jnp.float32))
        _, hs = jax.lax.scan(step, init, seq)
        return hs

    h = jnp.transpose(x, (1, 0, 2))
    for fwd_p, bwd_p in raw["lstm"]:
        h_f = run_dir(h, *fwd_p)
        h_b = jnp.flip(run_dir(jnp.flip(h, axis=0), *bwd_p), axis=0)
        h = jnp.concatenate([h_f, h_b], axis=-1)
    lo = jnp.transpose(h, (1, 0, 2))                                         # (B, S, 2H)
    m = jnp.tanh(lo)
    scores = jnp.einsum("bsd,d->bs", m, raw["alpha_w"][0]) + raw["alpha_b"][0]
    alpha = jax.nn.softmax(scores, axis=1)
    r = jnp.einsum("bsd,bs->bd", lo, alpha)
    return jnp.tanh(r) @ raw["fc_w"].T + raw["fc_b"]


if __name__ == "__main__":
    # NOTE: the PyTorch attention_layer reshapes with 2*input_size but alpha_net expects
    # 2*hidden_size, so the original module only works when input_size == hidden_size.
    batch, seq_len = 2, 8
    input_size = hidden_size = 32
    num_layers = 2
    num_classes = 5

    key = jax.random.PRNGKey(0)
    kx, kp = jax.random.split(key)
    x = jax.random.normal(kx, (batch, seq_len, input_size), jnp.float32)
    raw = init_raw_params(kp, input_size, hidden_size, num_layers, num_classes)
    params = prep_params(raw, hidden_size)

    fwd = jax.jit(attention_model_forward)
    out = jax.block_until_ready(fwd(x, params))
    ref = jax.block_until_ready(_reference_forward(x, raw))

    assert out.shape == (batch, num_classes)
    # bf16 MXU operands in the LSTM recurrence -> relaxed tolerance vs the f32 reference
    # (expected worst-case error ~5e-3; ~4x margin).
    np.testing.assert_allclose(np.asarray(out), np.asarray(ref), atol=2e-2, rtol=2e-2)
    print("KERNEL_OK")
</pallas_src>

<mosaic_0001>
module attributes {stable_mosaic.version = 11 : i64} {
  func.func @kernel(%arg0: memref<64x32xf32, #tpu.memory_space<vmem>>, %arg1: memref<32x256xf32, #tpu.memory_space<vmem>>, %arg2: memref<64x256xf32, #tpu.memory_space<vmem>>, %arg3: memref<1x256xf32, #tpu.memory_space<vmem>>, %arg4: memref<64x256xf32, #tpu.memory_space<vmem>>, %arg5: memref<64x256xf32, #tpu.memory_space<vmem>>, %arg6: memref<1x256xf32, #tpu.memory_space<vmem>>, %arg7: memref<64x1xf32, #tpu.memory_space<vmem>>, %arg8: memref<1x1xf32, #tpu.memory_space<smem>>, %arg9: memref<64x5xf32, #tpu.memory_space<vmem>>, %arg10: memref<1x5xf32, #tpu.memory_space<vmem>>, %arg11: memref<8x5xf32, #tpu.memory_space<vmem>>, %arg12: memref<64x64xf32, #tpu.memory_space<vmem>>, %arg13: memref<64x64xf32, #tpu.memory_space<vmem>>) attributes {dimension_semantics = [], scalar_prefetch = 0 : i64, scratch_operands = 2 : i64, tpu.core_type = #tpu.core_type<tc>} {
    %0 = tpu.iota {dimensions = array<i32: 1>} : vector<1x256xi32>
    %c64_i32 = arith.constant 64 : i32
    %c0_i32 = arith.constant 0 : i32
    %1 = arith.cmpi eq, %c64_i32, %c0_i32 : i32
    %c1_i32 = arith.constant 1 : i32
    %2 = arith.select %1, %c1_i32, %c64_i32 : i32
    %3 = vector.broadcast %2 : i32 to vector<1x256xi32>
    %4 = arith.remsi %0, %3 : vector<1x256xi32>
    %c0_i32_0 = arith.constant 0 : i32
    %5 = vector.broadcast %c0_i32_0 : i32 to vector<1x256xi32>
    %6 = arith.cmpi ne, %4, %5 : vector<1x256xi32>
    %c0_i32_1 = arith.constant 0 : i32
    %7 = vector.broadcast %c0_i32_1 : i32 to vector<1x256xi32>
    %8 = arith.cmpi slt, %4, %7 : vector<1x256xi32>
    %c0_i32_2 = arith.constant 0 : i32
    %9 = arith.cmpi slt, %2, %c0_i32_2 : i32
    %10 = vector.broadcast %9 : i1 to vector<1x256xi1>
    %11 = vector.broadcast %10 : vector<1x256xi1> to vector<1x256xi1>
    %12 = arith.xori %8, %11 : vector<1x256xi1>
    %13 = arith.andi %12, %6 : vector<1x256xi1>
    %14 = vector.broadcast %2 : i32 to vector<1x256xi32>
    %15 = arith.addi %4, %14 : vector<1x256xi32>
    %16 = arith.select %13, %15, %4 : vector<1x256xi1>, vector<1x256xi32>
    %c32_i32 = arith.constant 32 : i32
    %17 = vector.broadcast %c32_i32 : i32 to vector<1x256xi32>
    %18 = arith.cmpi slt, %16, %17 : vector<1x256xi32>
    %19 = tpu.iota {dimensions = array<i32: 1>} : vector<1x64xi32>
    %c32_i32_3 = arith.constant 32 : i32
    %20 = vector.broadcast %c32_i32_3 : i32 to vector<1x64xi32>
    %21 = arith.cmpi slt, %19, %20 : vector<1x64xi32>
    %c0 = arith.constant 0 : index
    %c0_4 = arith.constant 0 : index
    %22 = vector.load %arg0[%c0, %c0_4] : memref<64x32xf32, #tpu.memory_space<vmem>>, vector<64x32xf32>
    %23 = arith.truncf %22 : vector<64x32xf32> to vector<64x32xbf16>
    %c0_5 = arith.constant 0 : index
    %c0_6 = arith.constant 0 : index
    %24 = vector.load %arg1[%c0_5, %c0_6] : memref<32x256xf32, #tpu.memory_space<vmem>>, vector<32x256xf32>
    %25 = arith.truncf %24 : vector<32x256xf32> to vector<32x256xbf16>
    %cst = arith.constant dense<0.000000e+00> : vector<64x256xf32>
    %26 = tpu.matmul %23, %25, %cst {dimension_numbers = #tpu.dot_dimension_numbers<[1], [0], [0], [1], [0, 0, 1, 1], [], []>} : vector<64x32xbf16>, vector<32x256xbf16>, vector<64x256xf32> -> vector<64x256xf32>
    %c0_7 = arith.constant 0 : index
    %c0_8 = arith.constant 0 : index
    %27 = vector.load %arg3[%c0_7, %c0_8] : memref<1x256xf32, #tpu.memory_space<vmem>>, vector<1x256xf32>
    %28 = vector.broadcast %27 : vector<1x256xf32> to vector<64x256xf32>
    %29 = arith.addf %26, %28 : vector<64x256xf32>
    %30 = vector.extract_strided_slice %29 {offsets = [56, 0], sizes = [8, 256], strides = [1, 1]} : vector<64x256xf32> to vector<8x256xf32>
    %31 = vector.extract_strided_slice %29 {offsets = [48, 0], sizes = [8, 256], strides = [1, 1]} : vector<64x256xf32> to vector<8x256xf32>
    %32 = vector.extract_strided_slice %29 {offsets = [40, 0], sizes = [8, 256], strides = [1, 1]} : vector<64x256xf32> to vector<8x256xf32>
    %33 = vector.extract_strided_slice %29 {offsets = [32, 0], sizes = [8, 256], strides = [1, 1]} : vector<64x256xf32> to vector<8x256xf32>
    %34 = vector.extract_strided_slice %29 {offsets = [24, 0], sizes = [8, 256], strides = [1, 1]} : vector<64x256xf32> to vector<8x256xf32>
    %35 = vector.extract_strided_slice %29 {offsets = [16, 0], sizes = [8, 256], strides = [1, 1]} : vector<64x256xf32> to vector<8x256xf32>
    %36 = vector.extract_strided_slice %29 {offsets = [8, 0], sizes = [8, 256], strides = [1, 1]} : vector<64x256xf32> to vector<8x256xf32>
    %37 = vector.extract_strided_slice %29 {offsets = [0, 0], sizes = [8, 256], strides = [1, 1]} : vector<64x256xf32> to vector<8x256xf32>
    %38 = tpu.concatenate %30, %31, %32, %33, %34, %35, %36, %37 in 0 : vector<8x256xf32>, vector<8x256xf32>, vector<8x256xf32>, vector<8x256xf32>, vector<8x256xf32>, vector<8x256xf32>, vector<8x256xf32>, vector<8x256xf32> -> vector<64x256xf32>
    %39 = vector.shape_cast %18 : vector<1x256xi1> to vector<1x256xi1>
    %40 = vector.broadcast %39 : vector<1x256xi1> to vector<64x256xi1>
    %41 = arith.select %40, %29, %38 : vector<64x256xi1>, vector<64x256xf32>
    %c0_9 = arith.constant 0 : index
    %c0_10 = arith.constant 0 : index
    %42 = vector.load %arg2[%c0_9, %c0_10] : memref<64x256xf32, #tpu.memory_space<vmem>>, vector<64x256xf32>
    %43 = arith.truncf %42 : vector<64x256xf32> to vector<64x256xbf16>
    %cst_11 = arith.constant 0.000000e+00 : f32
    %44 = vector.broadcast %cst_11 : f32 to vector<8x64xf32>
    %cst_12 = arith.constant 0.000000e+00 : f32
    %45 = vector.broadcast %cst_12 : f32 to vector<8x64xf32>
    %46 = vector.extract_strided_slice %41 {offsets = [0, 0], sizes = [8, 256], strides = [1, 1]} : vector<64x256xf32> to vector<8x256xf32>
    %47 = arith.truncf %44 : vector<8x64xf32> to vector<8x64xbf16>
    %cst_13 = arith.constant dense<0.000000e+00> : vector<8x256xf32>
    %48 = tpu.matmul %47, %43, %cst_13 {dimension_numbers = #tpu.dot_dimension_numbers<[1], [0], [0], [1], [0, 0, 1, 1], [], []>} : vector<8x64xbf16>, vector<64x256xbf16>, vector<8x256xf32> -> vector<8x256xf32>
    %49 = arith.addf %46, %48 : vector<8x256xf32>
    %50 = vector.extract_strided_slice %49 {offsets = [0, 0], sizes = [8, 192], strides = [1, 1]} : vector<8x256xf32> to vector<8x192xf32>
    %51 = arith.negf %50 : vector<8x192xf32>
    %52 = math.exp %51 : vector<8x192xf32>
    %cst_14 = arith.constant 1.000000e+00 : f32
    %53 = vector.broadcast %cst_14 : f32 to vector<8x192xf32>
    %54 = arith.addf %53, %52 : vector<8x192xf32>
    %55 = arith.divf %53, %54 : vector<8x192xf32>
    %56 = vector.extract_strided_slice %49 {offsets = [0, 192], sizes = [8, 64], strides = [1, 1]} : vector<8x256xf32> to vector<8x64xf32>
    %57 = math.tanh %56 : vector<8x64xf32>
    %58 = vector.extract_strided_slice %55 {offsets = [0, 0], sizes = [8, 64], strides = [1, 1]} : vector<8x192xf32> to vector<8x64xf32>
    %59 = vector.extract_strided_slice %55 {offsets = [0, 64], sizes = [8, 64], strides = [1, 1]} : vector<8x192xf32> to vector<8x64xf32>
    %60 = vector.extract_strided_slice %55 {offsets = [0, 128], sizes = [8, 64], strides = [1, 1]} : vector<8x192xf32> to vector<8x64xf32>
    %61 = arith.mulf %59, %45 : vector<8x64xf32>
    %62 = arith.mulf %58, %57 : vector<8x64xf32>
    %63 = arith.addf %61, %62 : vector<8x64xf32>
    %64 = math.tanh %63 : vector<8x64xf32>
    %65 = arith.mulf %60, %64 : vector<8x64xf32>
    %c0_15 = arith.constant 0 : index
    %c0_16 = arith.constant 0 : index
    %66 = vector.load %arg12[%c0_15, %c0_16] : memref<64x64xf32, #tpu.memory_space<vmem>>, vector<8x64xf32>
    tpu.vector_store %arg12[%c0_15, %c0_16], %65 {strides = array<i32>} : memref<64x64xf32, #tpu.memory_space<vmem>>, vector<8x64xf32>,
    %67 = vector.extract_strided_slice %41 {offsets = [8, 0], sizes = [8, 256], strides = [1, 1]} : vector<64x256xf32> to vector<8x256xf32>
    %68 = arith.truncf %65 : vector<8x64xf32> to vector<8x64xbf16>
    %cst_17 = arith.constant dense<0.000000e+00> : vector<8x256xf32>
    %69 = tpu.matmul %68, %43, %cst_17 {dimension_numbers = #tpu.dot_dimension_numbers<[1], [0], [0], [1], [0, 0, 1, 1], [], []>} : vector<8x64xbf16>, vector<64x256xbf16>, vector<8x256xf32> -> vector<8x256xf32>
    %70 = arith.addf %67, %69 : vector<8x256xf32>
    %71 = vector.extract_strided_slice %70 {offsets = [0, 0], sizes = [8, 192], strides = [1, 1]} : vector<8x256xf32> to vector<8x192xf32>
    %72 = arith.negf %71 : vector<8x192xf32>
    %73 = math.exp %72 : vector<8x192xf32>
    %cst_18 = arith.constant 1.000000e+00 : f32
    %74 = vector.broadcast %cst_18 : f32 to vector<8x192xf32>
    %75 = arith.addf %74, %73 : vector<8x192xf32>
    %76 = arith.divf %74, %75 : vector<8x192xf32>
    %77 = vector.extract_strided_slice %70 {offsets = [0, 192], sizes = [8, 64], strides = [1, 1]} : vector<8x256xf32> to vector<8x64xf32>
    %78 = math.tanh %77 : vector<8x64xf32>
    %79 = vector.extract_strided_slice %76 {offsets = [0, 0], sizes = [8, 64], strides = [1, 1]} : vector<8x192xf32> to vector<8x64xf32>
    %80 = vector.extract_strided_slice %76 {offsets = [0, 64], sizes = [8, 64], strides = [1, 1]} : vector<8x192xf32> to vector<8x64xf32>
    %81 = vector.extract_strided_slice %76 {offsets = [0, 128], sizes = [8, 64], strides = [1, 1]} : vector<8x192xf32> to vector<8x64xf32>
    %82 = arith.mulf %80, %63 : vector<8x64xf32>
    %83 = arith.mulf %79, %78 : vector<8x64xf32>
    %84 = arith.addf %82, %83 : vector<8x64xf32>
    %85 = math.tanh %84 : vector<8x64xf32>
    %86 = arith.mulf %81, %85 : vector<8x64xf32>
    %c8 = arith.constant 8 : index
    %c0_19 = arith.constant 0 : index
    %87 = vector.load %arg12[%c8, %c0_19] : memref<64x64xf32, #tpu.memory_space<vmem>>, vector<8x64xf32>
    tpu.vector_store %arg12[%c8, %c0_19], %86 {strides = array<i32>} : memref<64x64xf32, #tpu.memory_space<vmem>>, vector<8x64xf32>,
    %88 = vector.extract_strided_slice %41 {offsets = [16, 0], sizes = [8, 256], strides = [1, 1]} : vector<64x256xf32> to vector<8x256xf32>
    %89 = arith.truncf %86 : vector<8x64xf32> to vector<8x64xbf16>
    %cst_20 = arith.constant dense<0.000000e+00> : vector<8x256xf32>
    %90 = tpu.matmul %89, %43, %cst_20 {dimension_numbers = #tpu.dot_dimension_numbers<[1], [0], [0], [1], [0, 0, 1, 1], [], []>} : vector<8x64xbf16>, vector<64x256xbf16>, vector<8x256xf32> -> vector<8x256xf32>
    %91 = arith.addf %88, %90 : vector<8x256xf32>
    %92 = vector.extract_strided_slice %91 {offsets = [0, 0], sizes = [8, 192], strides = [1, 1]} : vector<8x256xf32> to vector<8x192xf32>
    %93 = arith.negf %92 : vector<8x192xf32>
    %94 = math.exp %93 : vector<8x192xf32>
    %cst_21 = arith.constant 1.000000e+00 : f32
    %95 = vector.broadcast %cst_21 : f32 to vector<8x192xf32>
    %96 = arith.addf %95, %94 : vector<8x192xf32>
    %97 = arith.divf %95, %96 : vector<8x192xf32>
    %98 = vector.extract_strided_slice %91 {offsets = [0, 192], sizes = [8, 64], strides = [1, 1]} : vector<8x256xf32> to vector<8x64xf32>
    %99 = math.tanh %98 : vector<8x64xf32>
    %100 = vector.extract_strided_slice %97 {offsets = [0, 0], sizes = [8, 64], strides = [1, 1]} : vector<8x192xf32> to vector<8x64xf32>
    %101 = vector.extract_strided_slice %97 {offsets = [0, 64], sizes = [8, 64], strides = [1, 1]} : vector<8x192xf32> to vector<8x64xf32>
    %102 = vector.extract_strided_slice %97 {offsets = [0, 128], sizes = [8, 64], strides = [1, 1]} : vector<8x192xf32> to vector<8x64xf32>
    %103 = arith.mulf %101, %84 : vector<8x64xf32>
    %104 = arith.mulf %100, %99 : vector<8x64xf32>
    %105 = arith.addf %103, %104 : vector<8x64xf32>
    %106 = math.tanh %105 : vector<8x64xf32>
    %107 = arith.mulf %102, %106 : vector<8x64xf32>
    %c16 = arith.constant 16 : index
    %c0_22 = arith.constant 0 : index
    %108 = vector.load %arg12[%c16, %c0_22] : memref<64x64xf32, #tpu.memory_space<vmem>>, vector<8x64xf32>
    tpu.vector_store %arg12[%c16, %c0_22], %107 {strides = array<i32>} : memref<64x64xf32, #tpu.memory_space<vmem>>, vector<8x64xf32>,
    %109 = vector.extract_strided_slice %41 {offsets = [24, 0], sizes = [8, 256], strides = [1, 1]} : vector<64x256xf32> to vector<8x256xf32>
    %110 = arith.truncf %107 : vector<8x64xf32> to vector<8x64xbf16>
    %cst_23 = arith.constant dense<0.000000e+00> : vector<8x256xf32>
    %111 = tpu.matmul %110, %43, %cst_23 {dimension_numbers = #tpu.dot_dimension_numbers<[1], [0], [0], [1], [0, 0, 1, 1], [], []>} : vector<8x64xbf16>, vector<64x256xbf16>, vector<8x256xf32> -> vector<8x256xf32>
    %112 = arith.addf %109, %111 : vector<8x256xf32>
    %113 = vector.extract_strided_slice %112 {offsets = [0, 0], sizes = [8, 192], strides = [1, 1]} : vector<8x256xf32> to vector<8x192xf32>
    %114 = arith.negf %113 : vector<8x192xf32>
    %115 = math.exp %114 : vector<8x192xf32>
    %cst_24 = arith.constant 1.000000e+00 : f32
    %116 = vector.broadcast %cst_24 : f32 to vector<8x192xf32>
    %117 = arith.addf %116, %115 : vector<8x192xf32>
    %118 = arith.divf %116, %117 : vector<8x192xf32>
    %119 = vector.extract_strided_slice %112 {offsets = [0, 192], sizes = [8, 64], strides = [1, 1]} : vector<8x256xf32> to vector<8x64xf32>
    %120 = math.tanh %119 : vector<8x64xf32>
    %121 = vector.extract_strided_slice %118 {offsets = [0, 0], sizes = [8, 64], strides = [1, 1]} : vector<8x192xf32> to vector<8x64xf32>
    %122 = vector.extract_strided_slice %118 {offsets = [0, 64], sizes = [8, 64], strides = [1, 1]} : vector<8x192xf32> to vector<8x64xf32>
    %123 = vector.extract_strided_slice %118 {offsets = [0, 128], sizes = [8, 64], strides = [1, 1]} : vector<8x192xf32> to vector<8x64xf32>
    %124 = arith.mulf %122, %105 : vector<8x64xf32>
    %125 = arith.mulf %121, %120 : vector<8x64xf32>
    %126 = arith.addf %124, %125 : vector<8x64xf32>
    %127 = math.tanh %126 : vector<8x64xf32>
    %128 = arith.mulf %123, %127 : vector<8x64xf32>
    %c24 = arith.constant 24 : index
    %c0_25 = arith.constant 0 : index
    %129 = vector.load %arg12[%c24, %c0_25] : memref<64x64xf32, #tpu.memory_space<vmem>>, vector<8x64xf32>
    tpu.vector_store %arg12[%c24, %c0_25], %128 {strides = array<i32>} : memref<64x64xf32, #tpu.memory_space<vmem>>, vector<8x64xf32>,
    %130 = vector.extract_strided_slice %41 {offsets = [32, 0], sizes = [8, 256], strides = [1, 1]} : vector<64x256xf32> to vector<8x256xf32>
    %131 = arith.truncf %128 : vector<8x64xf32> to vector<8x64xbf16>
    %cst_26 = arith.constant dense<0.000000e+00> : vector<8x256xf32>
    %132 = tpu.matmul %131, %43, %cst_26 {dimension_numbers = #tpu.dot_dimension_numbers<[1], [0], [0], [1], [0, 0, 1, 1], [], []>} : vector<8x64xbf16>, vector<64x256xbf16>, vector<8x256xf32> -> vector<8x256xf32>
    %133 = arith.addf %130, %132 : vector<8x256xf32>
    %134 = vector.extract_strided_slice %133 {offsets = [0, 0], sizes = [8, 192], strides = [1, 1]} : vector<8x256xf32> to vector<8x192xf32>
    %135 = arith.negf %134 : vector<8x192xf32>
    %136 = math.exp %135 : vector<8x192xf32>
    %cst_27 = arith.constant 1.000000e+00 : f32
    %137 = vector.broadcast %cst_27 : f32 to vector<8x192xf32>
    %138 = arith.addf %137, %136 : vector<8x192xf32>
    %139 = arith.divf %137, %138 : vector<8x192xf32>
    %140 = vector.extract_strided_slice %133 {offsets = [0, 192], sizes = [8, 64], strides = [1, 1]} : vector<8x256xf32> to vector<8x64xf32>
    %141 = math.tanh %140 : vector<8x64xf32>
    %142 = vector.extract_strided_slice %139 {offsets = [0, 0], sizes = [8, 64], strides = [1, 1]} : vector<8x192xf32> to vector<8x64xf32>
    %143 = vector.extract_strided_slice %139 {offsets = [0, 64], sizes = [8, 64], strides = [1, 1]} : vector<8x192xf32> to vector<8x64xf32>
    %144 = vector.extract_strided_slice %139 {offsets = [0, 128], sizes = [8, 64], strides = [1, 1]} : vector<8x192xf32> to vector<8x64xf32>
    %145 = arith.mulf %143, %126 : vector<8x64xf32>
    %146 = arith.mulf %142, %141 : vector<8x64xf32>
    %147 = arith.addf %145, %146 : vector<8x64xf32>
    %148 = math.tanh %147 : vector<8x64xf32>
    %149 = arith.mulf %144, %148 : vector<8x64xf32>
    %c32 = arith.constant 32 : index
    %c0_28 = arith.constant 0 : index
    %150 = vector.load %arg12[%c32, %c0_28] : memref<64x64xf32, #tpu.memory_space<vmem>>, vector<8x64xf32>
    tpu.vector_store %arg12[%c32, %c0_28], %149 {strides = array<i32>} : memref<64x64xf32, #tpu.memory_space<vmem>>, vector<8x64xf32>,
    %151 = vector.extract_strided_slice %41 {offsets = [40, 0], sizes = [8, 256], strides = [1, 1]} : vector<64x256xf32> to vector<8x256xf32>
    %152 = arith.truncf %149 : vector<8x64xf32> to vector<8x64xbf16>
    %cst_29 = arith.constant dense<0.000000e+00> : vector<8x256xf32>
    %153 = tpu.matmul %152, %43, %cst_29 {dimension_numbers = #tpu.dot_dimension_numbers<[1], [0], [0], [1], [0, 0, 1, 1], [], []>} : vector<8x64xbf16>, vector<64x256xbf16>, vector<8x256xf32> -> vector<8x256xf32>
    %154 = arith.addf %151, %153 : vector<8x256xf32>
    %155 = vector.extract_strided_slice %154 {offsets = [0, 0], sizes = [8, 192], strides = [1, 1]} : vector<8x256xf32> to vector<8x192xf32>
    %156 = arith.negf %155 : vector<8x192xf32>
    %157 = math.exp %156 : vector<8x192xf32>
    %cst_30 = arith.constant 1.000000e+00 : f32
    %158 = vector.broadcast %cst_30 : f32 to vector<8x192xf32>
    %159 = arith.addf %158, %157 : vector<8x192xf32>
    %160 = arith.divf %158, %159 : vector<8x192xf32>
    %161 = vector.extract_strided_slice %154 {offsets = [0, 192], sizes = [8, 64], strides = [1, 1]} : vector<8x256xf32> to vector<8x64xf32>
    %162 = math.tanh %161 : vector<8x64xf32>
    %163 = vector.extract_strided_slice %160 {offsets = [0, 0], sizes = [8, 64], strides = [1, 1]} : vector<8x192xf32> to vector<8x64xf32>
    %164 = vector.extract_strided_slice %160 {offsets = [0, 64], sizes = [8, 64], strides = [1, 1]} : vector<8x192xf32> to vector<8x64xf32>
    %165 = vector.extract_strided_slice %160 {offsets = [0, 128], sizes = [8, 64], strides = [1, 1]} : vector<8x192xf32> to vector<8x64xf32>
    %166 = arith.mulf %164, %147 : vector<8x64xf32>
    %167 = arith.mulf %163, %162 : vector<8x64xf32>
    %168 = arith.addf %166, %167 : vector<8x64xf32>
    %169 = math.tanh %168 : vector<8x64xf32>
    %170 = arith.mulf %165, %169 : vector<8x64xf32>
    %c40 = arith.constant 40 : index
    %c0_31 = arith.constant 0 : index
    %171 = vector.load %arg12[%c40, %c0_31] : memref<64x64xf32, #tpu.memory_space<vmem>>, vector<8x64xf32>
    tpu.vector_store %arg12[%c40, %c0_31], %170 {strides = array<i32>} : memref<64x64xf32, #tpu.memory_space<vmem>>, vector<8x64xf32>,
    %172 = vector.extract_strided_slice %41 {offsets = [48, 0], sizes = [8, 256], strides = [1, 1]} : vector<64x256xf32> to vector<8x256xf32>
    %173 = arith.truncf %170 : vector<8x64xf32> to vector<8x64xbf16>
    %cst_32 = arith.constant dense<0.000000e+00> : vector<8x256xf32>
    %174 = tpu.matmul %173, %43, %cst_32 {dimension_numbers = #tpu.dot_dimension_numbers<[1], [0], [0], [1], [0, 0, 1, 1], [], []>} : vector<8x64xbf16>, vector<64x256xbf16>, vector<8x256xf32> -> vector<8x256xf32>
    %175 = arith.addf %172, %174 : vector<8x256xf32>
    %176 = vector.extract_strided_slice %175 {offsets = [0, 0], sizes = [8, 192], strides = [1, 1]} : vector<8x256xf32> to vector<8x192xf32>
    %177 = arith.negf %176 : vector<8x192xf32>
    %178 = math.exp %177 : vector<8x192xf32>
    %cst_33 = arith.constant 1.000000e+00 : f32
    %179 = vector.broadcast %cst_33 : f32 to vector<8x192xf32>
    %180 = arith.addf %179, %178 : vector<8x192xf32>
    %181 = arith.divf %179, %180 : vector<8x192xf32>
    %182 = vector.extract_strided_slice %175 {offsets = [0, 192], sizes = [8, 64], strides = [1, 1]} : vector<8x256xf32> to vector<8x64xf32>
    %183 = math.tanh %182 : vector<8x64xf32>
    %184 = vector.extract_strided_slice %181 {offsets = [0, 0], sizes = [8, 64], strides = [1, 1]} : vector<8x192xf32> to vector<8x64xf32>
    %185 = vector.extract_strided_slice %181 {offsets = [0, 64], sizes = [8, 64], strides = [1, 1]} : vector<8x192xf32> to vector<8x64xf32>
    %186 = vector.extract_strided_slice %181 {offsets = [0, 128], sizes = [8, 64], strides = [1, 1]} : vector<8x192xf32> to vector<8x64xf32>
    %187 = arith.mulf %185, %168 : vector<8x64xf32>
    %188 = arith.mulf %184, %183 : vector<8x64xf32>
    %189 = arith.addf %187, %188 : vector<8x64xf32>
    %190 = math.tanh %189 : vector<8x64xf32>
    %191 = arith.mulf %186, %190 : vector<8x64xf32>
    %c48 = arith.constant 48 : index
    %c0_34 = arith.constant 0 : index
    %192 = vector.load %arg12[%c48, %c0_34] : memref<64x64xf32, #tpu.memory_space<vmem>>, vector<8x64xf32>
    tpu.vector_store %arg12[%c48, %c0_34], %191 {strides = array<i32>} : memref<64x64xf32, #tpu.memory_space<vmem>>, vector<8x64xf32>,
    %193 = vector.extract_strided_slice %41 {offsets = [56, 0], sizes = [8, 256], strides = [1, 1]} : vector<64x256xf32> to vector<8x256xf32>
    %194 = arith.truncf %191 : vector<8x64xf32> to vector<8x64xbf16>
    %cst_35 = arith.constant dense<0.000000e+00> : vector<8x256xf32>
    %195 = tpu.matmul %194, %43, %cst_35 {dimension_numbers = #tpu.dot_dimension_numbers<[1], [0], [0], [1], [0, 0, 1, 1], [], []>} : vector<8x64xbf16>, vector<64x256xbf16>, vector<8x256xf32> -> vector<8x256xf32>
    %196 = arith.addf %193, %195 : vector<8x256xf32>
    %197 = vector.extract_strided_slice %196 {offsets = [0, 0], sizes = [8, 192], strides = [1, 1]} : vector<8x256xf32> to vector<8x192xf32>
    %198 = arith.negf %197 : vector<8x192xf32>
    %199 = math.exp %198 : vector<8x192xf32>
    %cst_36 = arith.constant 1.000000e+00 : f32
    %200 = vector.broadcast %cst_36 : f32 to vector<8x192xf32>
    %201 = arith.addf %200, %199 : vector<8x192xf32>
    %202 = arith.divf %200, %201 : vector<8x192xf32>
    %203 = vector.extract_strided_slice %196 {offsets = [0, 192], sizes = [8, 64], strides = [1, 1]} : vector<8x256xf32> to vector<8x64xf32>
    %204 = math.tanh %203 : vector<8x64xf32>
    %205 = vector.extract_strided_slice %202 {offsets = [0, 0], sizes = [8, 64], strides = [1, 1]} : vector<8x192xf32> to vector<8x64xf32>
    %206 = vector.extract_strided_slice %202 {offsets = [0, 64], sizes = [8, 64], strides = [1, 1]} : vector<8x192xf32> to vector<8x64xf32>
    %207 = vector.extract_strided_slice %202 {offsets = [0, 128], sizes = [8, 64], strides = [1, 1]} : vector<8x192xf32> to vector<8x64xf32>
    %208 = arith.mulf %206, %189 : vector<8x64xf32>
    %209 = arith.mulf %205, %204 : vector<8x64xf32>
    %210 = arith.addf %208, %209 : vector<8x64xf32>
    %211 = math.tanh %210 : vector<8x64xf32>
    %212 = arith.mulf %207, %211 : vector<8x64xf32>
    %c56 = arith.constant 56 : index
    %c0_37 = arith.constant 0 : index
    %213 = vector.load %arg12[%c56, %c0_37] : memref<64x64xf32, #tpu.memory_space<vmem>>, vector<8x64xf32>
    tpu.vector_store %arg12[%c56, %c0_37], %212 {strides = array<i32>} : memref<64x64xf32, #tpu.memory_space<vmem>>, vector<8x64xf32>,
    %c0_38 = arith.constant 0 : index
    %c0_39 = arith.constant 0 : index
    %214 = vector.load %arg12[%c0_38, %c0_39] : memref<64x64xf32, #tpu.memory_space<vmem>>, vector<64x64xf32>
    %215 = vector.extract_strided_slice %214 {offsets = [56, 0], sizes = [8, 64], strides = [1, 1]} : vector<64x64xf32> to vector<8x64xf32>
    %216 = vector.extract_strided_slice %214 {offsets = [48, 0], sizes = [8, 64], strides = [1, 1]} : vector<64x64xf32> to vector<8x64xf32>
    %217 = vector.extract_strided_slice %214 {offsets = [40, 0], sizes = [8, 64], strides = [1, 1]} : vector<64x64xf32> to vector<8x64xf32>
    %218 = vector.extract_strided_slice %214 {offsets = [32, 0], sizes = [8, 64], strides = [1, 1]} : vector<64x64xf32> to vector<8x64xf32>
    %219 = vector.extract_strided_slice %214 {offsets = [24, 0], sizes = [8, 64], strides = [1, 1]} : vector<64x64xf32> to vector<8x64xf32>
    %220 = vector.extract_strided_slice %214 {offsets = [16, 0], sizes = [8, 64], strides = [1, 1]} : vector<64x64xf32> to vector<8x64xf32>
    %221 = vector.extract_strided_slice %214 {offsets = [8, 0], sizes = [8, 64], strides = [1, 1]} : vector<64x64xf32> to vector<8x64xf32>
    %222 = vector.extract_strided_slice %214 {offsets = [0, 0], sizes = [8, 64], strides = [1, 1]} : vector<64x64xf32> to vector<8x64xf32>
    %223 = tpu.concatenate %215, %216, %217, %218, %219, %220, %221, %222 in 0 : vector<8x64xf32>, vector<8x64xf32>, vector<8x64xf32>, vector<8x64xf32>, vector<8x64xf32>, vector<8x64xf32>, vector<8x64xf32>, vector<8x64xf32> -> vector<64x64xf32>
    %224 = vector.shape_cast %21 : vector<1x64xi1> to vector<1x64xi1>
    %225 = vector.broadcast %224 : vector<1x64xi1> to vector<64x64xi1>
    %226 = arith.select %225, %214, %223 : vector<64x64xi1>, vector<64x64xf32>
    %227 = arith.truncf %226 : vector<64x64xf32> to vector<64x64xbf16>
    %c0_40 = arith.constant 0 : index
    %c0_41 = arith.constant 0 : index
    %228 = vector.load %arg4[%c0_40, %c0_41] : memref<64x256xf32, #tpu.memory_space<vmem>>, vector<64x256xf32>
    %229 = arith.truncf %228 : vector<64x256xf32> to vector<64x256xbf16>
    %cst_42 = arith.constant dense<0.000000e+00> : vector<64x256xf32>
    %230 = tpu.matmul %227, %229, %cst_42 {dimension_numbers = #tpu.dot_dimension_numbers<[1], [0], [0], [1], [0, 0, 1, 1], [], []>} : vector<64x64xbf16>, vector<64x256xbf16>, vector<64x256xf32> -> vector<64x256xf32>
    %c0_43 = arith.constant 0 : index
    %c0_44 = arith.constant 0 : index
    %231 = vector.load %arg6[%c0_43, %c0_44] : memref<1x256xf32, #tpu.memory_space<vmem>>, vector<1x256xf32>
    %232 = vector.broadcast %231 : vector<1x256xf32> to vector<64x256xf32>
    %233 = arith.addf %230, %232 : vector<64x256xf32>
    %234 = vector.extract_strided_slice %233 {offsets = [56, 0], sizes = [8, 256], strides = [1, 1]} : vector<64x256xf32> to vector<8x256xf32>
    %235 = vector.extract_strided_slice %233 {offsets = [48, 0], sizes = [8, 256], strides = [1, 1]} : vector<64x256xf32> to vector<8x256xf32>
    %236 = vector.extract_strided_slice %233 {offsets = [40, 0], sizes = [8, 256], strides = [1, 1]} : vector<64x256xf32> to vector<8x256xf32>
    %237 = vector.extract_strided_slice %233 {offsets = [32, 0], sizes = [8, 256], strides = [1, 1]} : vector<64x256xf32> to vector<8x256xf32>
    %238 = vector.extract_strided_slice %233 {offsets = [24, 0], sizes = [8, 256], strides = [1, 1]} : vector<64x256xf32> to vector<8x256xf32>
    %239 = vector.extract_strided_slice %233 {offsets = [16, 0], sizes = [8, 256], strides = [1, 1]} : vector<64x256xf32> to vector<8x256xf32>
    %240 = vector.extract_strided_slice %233 {offsets = [8, 0], sizes = [8, 256], strides = [1, 1]} : vector<64x256xf32> to vector<8x256xf32>
    %241 = vector.extract_strided_slice %233 {offsets = [0, 0], sizes = [8, 256], strides = [1, 1]} : vector<64x256xf32> to vector<8x256xf32>
    %242 = tpu.concatenate %234, %235, %236, %237, %238, %239, %240, %241 in 0 : vector<8x256xf32>, vector<8x256xf32>, vector<8x256xf32>, vector<8x256xf32>, vector<8x256xf32>, vector<8x256xf32>, vector<8x256xf32>, vector<8x256xf32> -> vector<64x256xf32>
    %243 = vector.shape_cast %18 : vector<1x256xi1> to vector<1x256xi1>
    %244 = vector.broadcast %243 : vector<1x256xi1> to vector<64x256xi1>
    %245 = arith.select %244, %233, %242 : vector<64x256xi1>, vector<64x256xf32>
    %c0_45 = arith.constant 0 : index
    %c0_46 = arith.constant 0 : index
    %246 = vector.load %arg5[%c0_45, %c0_46] : memref<64x256xf32, #tpu.memory_space<vmem>>, vector<64x256xf32>
    %247 = arith.truncf %246 : vector<64x256xf32> to vector<64x256xbf16>
    %cst_47 = arith.constant 0.000000e+00 : f32
    %248 = vector.broadcast %cst_47 : f32 to vector<8x64xf32>
    %cst_48 = arith.constant 0.000000e+00 : f32
    %249 = vector.broadcast %cst_48 : f32 to vector<8x64xf32>
    %250 = vector.extract_strided_slice %245 {offsets = [0, 0], sizes = [8, 256], strides = [1, 1]} : vector<64x256xf32> to vector<8x256xf32>
    %251 = arith.truncf %248 : vector<8x64xf32> to vector<8x64xbf16>
    %cst_49 = arith.constant dense<0.000000e+00> : vector<8x256xf32>
    %252 = tpu.matmul %251, %247, %cst_49 {dimension_numbers = #tpu.dot_dimension_numbers<[1], [0], [0], [1], [0, 0, 1, 1], [], []>} : vector<8x64xbf16>, vector<64x256xbf16>, vector<8x256xf32> -> vector<8x256xf32>
    %253 = arith.addf %250, %252 : vector<8x256xf32>
    %254 = vector.extract_strided_slice %253 {offsets = [0, 0], sizes = [8, 192], strides = [1, 1]} : vector<8x256xf32> to vector<8x192xf32>
    %255 = arith.negf %254 : vector<8x192xf32>
    %256 = math.exp %255 : vector<8x192xf32>
    %cst_50 = arith.constant 1.000000e+00 : f32
    %257 = vector.broadcast %cst_50 : f32 to vector<8x192xf32>
    %258 = arith.addf %257, %256 : vector<8x192xf32>
    %259 = arith.divf %257, %258 : vector<8x192xf32>
    %260 = vector.extract_strided_slice %253 {offsets = [0, 192], sizes = [8, 64], strides = [1, 1]} : vector<8x256xf32> to vector<8x64xf32>
    %261 = math.tanh %260 : vector<8x64xf32>
    %262 = vector.extract_strided_slice %259 {offsets = [0, 0], sizes = [8, 64], strides = [1, 1]} : vector<8x192xf32> to vector<8x64xf32>
    %263 = vector.extract_strided_slice %259 {offsets = [0, 64], sizes = [8, 64], strides = [1, 1]} : vector<8x192xf32> to vector<8x64xf32>
    %264 = vector.extract_strided_slice %259 {offsets = [0, 128], sizes = [8, 64], strides = [1, 1]} : vector<8x192xf32> to vector<8x64xf32>
    %265 = arith.mulf %263, %249 : vector<8x64xf32>
    %266 = arith.mulf %262, %261 : vector<8x64xf32>
    %267 = arith.addf %265, %266 : vector<8x64xf32>
    %268 = math.tanh %267 : vector<8x64xf32>
    %269 = arith.mulf %264, %268 : vector<8x64xf32>
    %c0_51 = arith.constant 0 : index
    %c0_52 = arith.constant 0 : index
    %270 = vector.load %arg13[%c0_51, %c0_52] : memref<64x64xf32, #tpu.memory_space<vmem>>, vector<8x64xf32>
    tpu.vector_store %arg13[%c0_51, %c0_52], %269 {strides = array<i32>} : memref<64x64xf32, #tpu.memory_space<vmem>>, vector<8x64xf32>,
    %271 = vector.extract_strided_slice %245 {offsets = [8, 0], sizes = [8, 256], strides = [1, 1]} : vector<64x256xf32> to vector<8x256xf32>
    %272 = arith.truncf %269 : vector<8x64xf32> to vector<8x64xbf16>
    %cst_53 = arith.constant dense<0.000000e+00> : vector<8x256xf32>
    %273 = tpu.matmul %272, %247, %cst_53 {dimension_numbers = #tpu.dot_dimension_numbers<[1], [0], [0], [1], [0, 0, 1, 1], [], []>} : vector<8x64xbf16>, vector<64x256xbf16>, vector<8x256xf32> -> vector<8x256xf32>
    %274 = arith.addf %271, %273 : vector<8x256xf32>
    %275 = vector.extract_strided_slice %274 {offsets = [0, 0], sizes = [8, 192], strides = [1, 1]} : vector<8x256xf32> to vector<8x192xf32>
    %276 = arith.negf %275 : vector<8x192xf32>
    %277 = math.exp %276 : vector<8x192xf32>
    %cst_54 = arith.constant 1.000000e+00 : f32
    %278 = vector.broadcast %cst_54 : f32 to vector<8x192xf32>
    %279 = arith.addf %278, %277 : vector<8x192xf32>
    %280 = arith.divf %278, %279 : vector<8x192xf32>
    %281 = vector.extract_strided_slice %274 {offsets = [0, 192], sizes = [8, 64], strides = [1, 1]} : vector<8x256xf32> to vector<8x64xf32>
    %282 = math.tanh %281 : vector<8x64xf32>
    %283 = vector.extract_strided_slice %280 {offsets = [0, 0], sizes = [8, 64], strides = [1, 1]} : vector<8x192xf32> to vector<8x64xf32>
    %284 = vector.extract_strided_slice %280 {offsets = [0, 64], sizes = [8, 64], strides = [1, 1]} : vector<8x192xf32> to vector<8x64xf32>
    %285 = vector.extract_strided_slice %280 {offsets = [0, 128], sizes = [8, 64], strides = [1, 1]} : vector<8x192xf32> to vector<8x64xf32>
    %286 = arith.mulf %284, %267 : vector<8x64xf32>
    %287 = arith.mulf %283, %282 : vector<8x64xf32>
    %288 = arith.addf %286, %287 : vector<8x64xf32>
    %289 = math.tanh %288 : vector<8x64xf32>
    %290 = arith.mulf %285, %289 : vector<8x64xf32>
    %c8_55 = arith.constant 8 : index
    %c0_56 = arith.constant 0 : index
    %291 = vector.load %arg13[%c8_55, %c0_56] : memref<64x64xf32, #tpu.memory_space<vmem>>, vector<8x64xf32>
    tpu.vector_store %arg13[%c8_55, %c0_56], %290 {strides = array<i32>} : memref<64x64xf32, #tpu.memory_space<vmem>>, vector<8x64xf32>,
    %292 = vector.extract_strided_slice %245 {offsets = [16, 0], sizes = [8, 256], strides = [1, 1]} : vector<64x256xf32> to vector<8x256xf32>
    %293 = arith.truncf %290 : vector<8x64xf32> to vector<8x64xbf16>
    %cst_57 = arith.constant dense<0.000000e+00> : vector<8x256xf32>
    %294 = tpu.matmul %293, %247, %cst_57 {dimension_numbers = #tpu.dot_dimension_numbers<[1], [0], [0], [1], [0, 0, 1, 1], [], []>} : vector<8x64xbf16>, vector<64x256xbf16>, vector<8x256xf32> -> vector<8x256xf32>
    %295 = arith.addf %292, %294 : vector<8x256xf32>
    %296 = vector.extract_strided_slice %295 {offsets = [0, 0], sizes = [8, 192], strides = [1, 1]} : vector<8x256xf32> to vector<8x192xf32>
    %297 = arith.negf %296 : vector<8x192xf32>
    %298 = math.exp %297 : vector<8x192xf32>
    %cst_58 = arith.constant 1.000000e+00 : f32
    %299 = vector.broadcast %cst_58 : f32 to vector<8x192xf32>
    %300 = arith.addf %299, %298 : vector<8x192xf32>
    %301 = arith.divf %299, %300 : vector<8x192xf32>
    %302 = vector.extract_strided_slice %295 {offsets = [0, 192], sizes = [8, 64], strides = [1, 1]} : vector<8x256xf32> to vector<8x64xf32>
    %303 = math.tanh %302 : vector<8x64xf32>
    %304 = vector.extract_strided_slice %301 {offsets = [0, 0], sizes = [8, 64], strides = [1, 1]} : vector<8x192xf32> to vector<8x64xf32>
    %305 = vector.extract_strided_slice %301 {offsets = [0, 64], sizes = [8, 64], strides = [1, 1]} : vector<8x192xf32> to vector<8x64xf32>
    %306 = vector.extract_strided_slice %301 {offsets = [0, 128], sizes = [8, 64], strides = [1, 1]} : vector<8x192xf32> to vector<8x64xf32>
    %307 = arith.mulf %305, %288 : vector<8x64xf32>
    %308 = arith.mulf %304, %303 : vector<8x64xf32>
    %309 = arith.addf %307, %308 : vector<8x64xf32>
    %310 = math.tanh %309 : vector<8x64xf32>
    %311 = arith.mulf %306, %310 : vector<8x64xf32>
    %c16_59 = arith.constant 16 : index
    %c0_60 = arith.constant 0 : index
    %312 = vector.load %arg13[%c16_59, %c0_60] : memref<64x64xf32, #tpu.memory_space<vmem>>, vector<8x64xf32>
    tpu.vector_store %arg13[%c16_59, %c0_60], %311 {strides = array<i32>} : memref<64x64xf32, #tpu.memory_space<vmem>>, vector<8x64xf32>,
    %313 = vector.extract_strided_slice %245 {offsets = [24, 0], sizes = [8, 256], strides = [1, 1]} : vector<64x256xf32> to vector<8x256xf32>
    %314 = arith.truncf %311 : vector<8x64xf32> to vector<8x64xbf16>
    %cst_61 = arith.constant dense<0.000000e+00> : vector<8x256xf32>
    %315 = tpu.matmul %314, %247, %cst_61 {dimension_numbers = #tpu.dot_dimension_numbers<[1], [0], [0], [1], [0, 0, 1, 1], [], []>} : vector<8x64xbf16>, vector<64x256xbf16>, vector<8x256xf32> -> vector<8x256xf32>
    %316 = arith.addf %313, %315 : vector<8x256xf32>
    %317 = vector.extract_strided_slice %316 {offsets = [0, 0], sizes = [8, 192], strides = [1, 1]} : vector<8x256xf32> to vector<8x192xf32>
    %318 = arith.negf %317 : vector<8x192xf32>
    %319 = math.exp %318 : vector<8x192xf32>
    %cst_62 = arith.constant 1.000000e+00 : f32
    %320 = vector.broadcast %cst_62 : f32 to vector<8x192xf32>
    %321 = arith.addf %320, %319 : vector<8x192xf32>
    %322 = arith.divf %320, %321 : vector<8x192xf32>
    %323 = vector.extract_strided_slice %316 {offsets = [0, 192], sizes = [8, 64], strides = [1, 1]} : vector<8x256xf32> to vector<8x64xf32>
    %324 = math.tanh %323 : vector<8x64xf32>
    %325 = vector.extract_strided_slice %322 {offsets = [0, 0], sizes = [8, 64], strides = [1, 1]} : vector<8x192xf32> to vector<8x64xf32>
    %326 = vector.extract_strided_slice %322 {offsets = [0, 64], sizes = [8, 64], strides = [1, 1]} : vector<8x192xf32> to vector<8x64xf32>
    %327 = vector.extract_strided_slice %322 {offsets = [0, 128], sizes = [8, 64], strides = [1, 1]} : vector<8x192xf32> to vector<8x64xf32>
    %328 = arith.mulf %326, %309 : vector<8x64xf32>
    %329 = arith.mulf %325, %324 : vector<8x64xf32>
    %330 = arith.addf %328, %329 : vector<8x64xf32>
    %331 = math.tanh %330 : vector<8x64xf32>
    %332 = arith.mulf %327, %331 : vector<8x64xf32>
    %c24_63 = arith.constant 24 : index
    %c0_64 = arith.constant 0 : index
    %333 = vector.load %arg13[%c24_63, %c0_64] : memref<64x64xf32, #tpu.memory_space<vmem>>, vector<8x64xf32>
    tpu.vector_store %arg13[%c24_63, %c0_64], %332 {strides = array<i32>} : memref<64x64xf32, #tpu.memory_space<vmem>>, vector<8x64xf32>,
    %334 = vector.extract_strided_slice %245 {offsets = [32, 0], sizes = [8, 256], strides = [1, 1]} : vector<64x256xf32> to vector<8x256xf32>
    %335 = arith.truncf %332 : vector<8x64xf32> to vector<8x64xbf16>
    %cst_65 = arith.constant dense<0.000000e+00> : vector<8x256xf32>
    %336 = tpu.matmul %335, %247, %cst_65 {dimension_numbers = #tpu.dot_dimension_numbers<[1], [0], [0], [1], [0, 0, 1, 1], [], []>} : vector<8x64xbf16>, vector<64x256xbf16>, vector<8x256xf32> -> vector<8x256xf32>
    %337 = arith.addf %334, %336 : vector<8x256xf32>
    %338 = vector.extract_strided_slice %337 {offsets = [0, 0], sizes = [8, 192], strides = [1, 1]} : vector<8x256xf32> to vector<8x192xf32>
    %339 = arith.negf %338 : vector<8x192xf32>
    %340 = math.exp %339 : vector<8x192xf32>
    %cst_66 = arith.constant 1.000000e+00 : f32
    %341 = vector.broadcast %cst_66 : f32 to vector<8x192xf32>
    %342 = arith.addf %341, %340 : vector<8x192xf32>
    %343 = arith.divf %341, %342 : vector<8x192xf32>
    %344 = vector.extract_strided_slice %337 {offsets = [0, 192], sizes = [8, 64], strides = [1, 1]} : vector<8x256xf32> to vector<8x64xf32>
    %345 = math.tanh %344 : vector<8x64xf32>
    %346 = vector.extract_strided_slice %343 {offsets = [0, 0], sizes = [8, 64], strides = [1, 1]} : vector<8x192xf32> to vector<8x64xf32>
    %347 = vector.extract_strided_slice %343 {offsets = [0, 64], sizes = [8, 64], strides = [1, 1]} : vector<8x192xf32> to vector<8x64xf32>
    %348 = vector.extract_strided_slice %343 {offsets = [0, 128], sizes = [8, 64], strides = [1, 1]} : vector<8x192xf32> to vector<8x64xf32>
    %349 = arith.mulf %347, %330 : vector<8x64xf32>
    %350 = arith.mulf %346, %345 : vector<8x64xf32>
    %351 = arith.addf %349, %350 : vector<8x64xf32>
    %352 = math.tanh %351 : vector<8x64xf32>
    %353 = arith.mulf %348, %352 : vector<8x64xf32>
    %c32_67 = arith.constant 32 : index
    %c0_68 = arith.constant 0 : index
    %354 = vector.load %arg13[%c32_67, %c0_68] : memref<64x64xf32, #tpu.memory_space<vmem>>, vector<8x64xf32>
    tpu.vector_store %arg13[%c32_67, %c0_68], %353 {strides = array<i32>} : memref<64x64xf32, #tpu.memory_space<vmem>>, vector<8x64xf32>,
    %355 = vector.extract_strided_slice %245 {offsets = [40, 0], sizes = [8, 256], strides = [1, 1]} : vector<64x256xf32> to vector<8x256xf32>
    %356 = arith.truncf %353 : vector<8x64xf32> to vector<8x64xbf16>
    %cst_69 = arith.constant dense<0.000000e+00> : vector<8x256xf32>
    %357 = tpu.matmul %356, %247, %cst_69 {dimension_numbers = #tpu.dot_dimension_numbers<[1], [0], [0], [1], [0, 0, 1, 1], [], []>} : vector<8x64xbf16>, vector<64x256xbf16>, vector<8x256xf32> -> vector<8x256xf32>
    %358 = arith.addf %355, %357 : vector<8x256xf32>
    %359 = vector.extract_strided_slice %358 {offsets = [0, 0], sizes = [8, 192], strides = [1, 1]} : vector<8x256xf32> to vector<8x192xf32>
    %360 = arith.negf %359 : vector<8x192xf32>
    %361 = math.exp %360 : vector<8x192xf32>
    %cst_70 = arith.constant 1.000000e+00 : f32
    %362 = vector.broadcast %cst_70 : f32 to vector<8x192xf32>
    %363 = arith.addf %362, %361 : vector<8x192xf32>
    %364 = arith.divf %362, %363 : vector<8x192xf32>
    %365 = vector.extract_strided_slice %358 {offsets = [0, 192], sizes = [8, 64], strides = [1, 1]} : vector<8x256xf32> to vector<8x64xf32>
    %366 = math.tanh %365 : vector<8x64xf32>
    %367 = vector.extract_strided_slice %364 {offsets = [0, 0], sizes = [8, 64], strides = [1, 1]} : vector<8x192xf32> to vector<8x64xf32>
    %368 = vector.extract_strided_slice %364 {offsets = [0, 64], sizes = [8, 64], strides = [1, 1]} : vector<8x192xf32> to vector<8x64xf32>
    %369 = vector.extract_strided_slice %364 {offsets = [0, 128], sizes = [8, 64], strides = [1, 1]} : vector<8x192xf32> to vector<8x64xf32>
    %370 = arith.mulf %368, %351 : vector<8x64xf32>
    %371 = arith.mulf %367, %366 : vector<8x64xf32>
    %372 = arith.addf %370, %371 : vector<8x64xf32>
    %373 = math.tanh %372 : vector<8x64xf32>
    %374 = arith.mulf %369, %373 : vector<8x64xf32>
    %c40_71 = arith.constant 40 : index
    %c0_72 = arith.constant 0 : index
    %375 = vector.load %arg13[%c40_71, %c0_72] : memref<64x64xf32, #tpu.memory_space<vmem>>, vector<8x64xf32>
    tpu.vector_store %arg13[%c40_71, %c0_72], %374 {strides = array<i32>} : memref<64x64xf32, #tpu.memory_space<vmem>>, vector<8x64xf32>,
    %376 = vector.extract_strided_slice %245 {offsets = [48, 0], sizes = [8, 256], strides = [1, 1]} : vector<64x256xf32> to vector<8x256xf32>
    %377 = arith.truncf %374 : vector<8x64xf32> to vector<8x64xbf16>
    %cst_73 = arith.constant dense<0.000000e+00> : vector<8x256xf32>
    %378 = tpu.matmul %377, %247, %cst_73 {dimension_numbers = #tpu.dot_dimension_numbers<[1], [0], [0], [1], [0, 0, 1, 1], [], []>} : vector<8x64xbf16>, vector<64x256xbf16>, vector<8x256xf32> -> vector<8x256xf32>
    %379 = arith.addf %376, %378 : vector<8x256xf32>
    %380 = vector.extract_strided_slice %379 {offsets = [0, 0], sizes = [8, 192], strides = [1, 1]} : vector<8x256xf32> to vector<8x192xf32>
    %381 = arith.negf %380 : vector<8x192xf32>
    %382 = math.exp %381 : vector<8x192xf32>
    %cst_74 = arith.constant 1.000000e+00 : f32
    %383 = vector.broadcast %cst_74 : f32 to vector<8x192xf32>
    %384 = arith.addf %383, %382 : vector<8x192xf32>
    %385 = arith.divf %383, %384 : vector<8x192xf32>
    %386 = vector.extract_strided_slice %379 {offsets = [0, 192], sizes = [8, 64], strides = [1, 1]} : vector<8x256xf32> to vector<8x64xf32>
    %387 = math.tanh %386 : vector<8x64xf32>
    %388 = vector.extract_strided_slice %385 {offsets = [0, 0], sizes = [8, 64], strides = [1, 1]} : vector<8x192xf32> to vector<8x64xf32>
    %389 = vector.extract_strided_slice %385 {offsets = [0, 64], sizes = [8, 64], strides = [1, 1]} : vector<8x192xf32> to vector<8x64xf32>
    %390 = vector.extract_strided_slice %385 {offsets = [0, 128], sizes = [8, 64], strides = [1, 1]} : vector<8x192xf32> to vector<8x64xf32>
    %391 = arith.mulf %389, %372 : vector<8x64xf32>
    %392 = arith.mulf %388, %387 : vector<8x64xf32>
    %393 = arith.addf %391, %392 : vector<8x64xf32>
    %394 = math.tanh %393 : vector<8x64xf32>
    %395 = arith.mulf %390, %394 : vector<8x64xf32>
    %c48_75 = arith.constant 48 : index
    %c0_76 = arith.constant 0 : index
    %396 = vector.load %arg13[%c48_75, %c0_76] : memref<64x64xf32, #tpu.memory_space<vmem>>, vector<8x64xf32>
    tpu.vector_store %arg13[%c48_75, %c0_76], %395 {strides = array<i32>} : memref<64x64xf32, #tpu.memory_space<vmem>>, vector<8x64xf32>,
    %397 = vector.extract_strided_slice %245 {offsets = [56, 0], sizes = [8, 256], strides = [1, 1]} : vector<64x256xf32> to vector<8x256xf32>
    %398 = arith.truncf %395 : vector<8x64xf32> to vector<8x64xbf16>
    %cst_77 = arith.constant dense<0.000000e+00> : vector<8x256xf32>
    %399 = tpu.matmul %398, %247, %cst_77 {dimension_numbers = #tpu.dot_dimension_numbers<[1], [0], [0], [1], [0, 0, 1, 1], [], []>} : vector<8x64xbf16>, vector<64x256xbf16>, vector<8x256xf32> -> vector<8x256xf32>
    %400 = arith.addf %397, %399 : vector<8x256xf32>
    %401 = vector.extract_strided_slice %400 {offsets = [0, 0], sizes = [8, 192], strides = [1, 1]} : vector<8x256xf32> to vector<8x192xf32>
    %402 = arith.negf %401 : vector<8x192xf32>
    %403 = math.exp %402 : vector<8x192xf32>
    %cst_78 = arith.constant 1.000000e+00 : f32
    %404 = vector.broadcast %cst_78 : f32 to vector<8x192xf32>
    %405 = arith.addf %404, %403 : vector<8x192xf32>
    %406 = arith.divf %404, %405 : vector<8x192xf32>
    %407 = vector.extract_strided_slice %400 {offsets = [0, 192], sizes = [8, 64], strides = [1, 1]} : vector<8x256xf32> to vector<8x64xf32>
    %408 = math.tanh %407 : vector<8x64xf32>
    %409 = vector.extract_strided_slice %406 {offsets = [0, 0], sizes = [8, 64], strides = [1, 1]} : vector<8x192xf32> to vector<8x64xf32>
    %410 = vector.extract_strided_slice %406 {offsets = [0, 64], sizes = [8, 64], strides = [1, 1]} : vector<8x192xf32> to vector<8x64xf32>
    %411 = vector.extract_strided_slice %406 {offsets = [0, 128], sizes = [8, 64], strides = [1, 1]} : vector<8x192xf32> to vector<8x64xf32>
    %412 = arith.mulf %410, %393 : vector<8x64xf32>
    %413 = arith.mulf %409, %408 : vector<8x64xf32>
    %414 = arith.addf %412, %413 : vector<8x64xf32>
    %415 = math.tanh %414 : vector<8x64xf32>
    %416 = arith.mulf %411, %415 : vector<8x64xf32>
    %c56_79 = arith.constant 56 : index
    %c0_80 = arith.constant 0 : index
    %417 = vector.load %arg13[%c56_79, %c0_80] : memref<64x64xf32, #tpu.memory_space<vmem>>, vector<8x64xf32>
    tpu.vector_store %arg13[%c56_79, %c0_80], %416 {strides = array<i32>} : memref<64x64xf32, #tpu.memory_space<vmem>>, vector<8x64xf32>,
    %c0_81 = arith.constant 0 : index
    %c0_82 = arith.constant 0 : index
    %418 = vector.load %arg13[%c0_81, %c0_82] : memref<64x64xf32, #tpu.memory_space<vmem>>, vector<64x64xf32>
    %419 = vector.extract_strided_slice %418 {offsets = [56, 0], sizes = [8, 64], strides = [1, 1]} : vector<64x64xf32> to vector<8x64xf32>
    %420 = vector.extract_strided_slice %418 {offsets = [48, 0], sizes = [8, 64], strides = [1, 1]} : vector<64x64xf32> to vector<8x64xf32>
    %421 = vector.extract_strided_slice %418 {offsets = [40, 0], sizes = [8, 64], strides = [1, 1]} : vector<64x64xf32> to vector<8x64xf32>
    %422 = vector.extract_strided_slice %418 {offsets = [32, 0], sizes = [8, 64], strides = [1, 1]} : vector<64x64xf32> to vector<8x64xf32>
    %423 = vector.extract_strided_slice %418 {offsets = [24, 0], sizes = [8, 64], strides = [1, 1]} : vector<64x64xf32> to vector<8x64xf32>
    %424 = vector.extract_strided_slice %418 {offsets = [16, 0], sizes = [8, 64], strides = [1, 1]} : vector<64x64xf32> to vector<8x64xf32>
    %425 = vector.extract_strided_slice %418 {offsets = [8, 0], sizes = [8, 64], strides = [1, 1]} : vector<64x64xf32> to vector<8x64xf32>
    %426 = vector.extract_strided_slice %418 {offsets = [0, 0], sizes = [8, 64], strides = [1, 1]} : vector<64x64xf32> to vector<8x64xf32>
    %427 = tpu.concatenate %419, %420, %421, %422, %423, %424, %425, %426 in 0 : vector<8x64xf32>, vector<8x64xf32>, vector<8x64xf32>, vector<8x64xf32>, vector<8x64xf32>, vector<8x64xf32>, vector<8x64xf32>, vector<8x64xf32> -> vector<64x64xf32>
    %428 = vector.shape_cast %21 : vector<1x64xi1> to vector<1x64xi1>
    %429 = vector.broadcast %428 : vector<1x64xi1> to vector<64x64xi1>
    %430 = arith.select %429, %418, %427 : vector<64x64xi1>, vector<64x64xf32>
    %431 = math.tanh %430 : vector<64x64xf32>
    %c0_83 = arith.constant 0 : index
    %c0_84 = arith.constant 0 : index
    %432 = vector.load %arg7[%c0_83, %c0_84] : memref<64x1xf32, #tpu.memory_space<vmem>>, vector<64x1xf32>
    %cst_85 = arith.constant dense<0.000000e+00> : vector<64x1xf32>
    %433 = tpu.matmul %431, %432, %cst_85 {dimension_numbers = #tpu.dot_dimension_numbers<[1], [0], [0], [1], [0, 0, 1, 1], [], []>} : vector<64x64xf32>, vector<64x1xf32>, vector<64x1xf32> -> vector<64x1xf32>
    %c0_86 = arith.constant 0 : index
    %c0_87 = arith.constant 0 : index
    %434 = memref.load %arg8[%c0_86, %c0_87] : memref<1x1xf32, #tpu.memory_space<smem>>
    %435 = vector.broadcast %434 : f32 to vector<64x1xf32>
    %436 = arith.addf %433, %435 : vector<64x1xf32>
    %cst_88 = arith.constant dense<0xFF800000> : vector<1xf32>
    %437 = vector.multi_reduction <maximumf>, %436, %cst_88 [0] : vector<64x1xf32> to vector<1xf32>
    %438 = vector.shape_cast %437 : vector<1xf32> to vector<1x1xf32>
    %439 = vector.broadcast %438 : vector<1x1xf32> to vector<64x1xf32>
    %440 = arith.subf %436, %439 : vector<64x1xf32>
    %441 = math.exp %440 : vector<64x1xf32>
    %442 = tpu.iota {dimensions = array<i32: 0>} : vector<8x64xi32>
    %443 = tpu.iota {dimensions = array<i32: 1>} : vector<8x64xi32>
    %c8_i32 = arith.constant 8 : i32
    %c0_i32_89 = arith.constant 0 : i32
    %444 = arith.cmpi eq, %c8_i32, %c0_i32_89 : i32
    %c1_i32_90 = arith.constant 1 : i32
    %445 = arith.select %444, %c1_i32_90, %c8_i32 : i32
    %446 = vector.broadcast %445 : i32 to vector<8x64xi32>
    %447 = arith.remsi %443, %446 : vector<8x64xi32>
    %c0_i32_91 = arith.constant 0 : i32
    %448 = vector.broadcast %c0_i32_91 : i32 to vector<8x64xi32>
    %449 = arith.cmpi ne, %447, %448 : vector<8x64xi32>
    %c0_i32_92 = arith.constant 0 : i32
    %450 = vector.broadcast %c0_i32_92 : i32 to vector<8x64xi32>
    %451 = arith.cmpi slt, %447, %450 : vector<8x64xi32>
    %c0_i32_93 = arith.constant 0 : i32
    %452 = arith.cmpi slt, %445, %c0_i32_93 : i32
    %453 = vector.broadcast %452 : i1 to vector<8x64xi1>
    %454 = vector.broadcast %453 : vector<8x64xi1> to vector<8x64xi1>
    %455 = arith.xori %451, %454 : vector<8x64xi1>
    %456 = arith.andi %455, %449 : vector<8x64xi1>
    %457 = vector.broadcast %445 : i32 to vector<8x64xi32>
    %458 = arith.addi %447, %457 : vector<8x64xi32>
    %459 = arith.select %456, %458, %447 : vector<8x64xi1>, vector<8x64xi32>
    %460 = arith.cmpi eq, %459, %442 : vector<8x64xi32>
    %461 = arith.extui %460 : vector<8x64xi1> to vector<8x64xi32>
    %462 = arith.sitofp %461 : vector<8x64xi32> to vector<8x64xf32>
    %463 = vector.broadcast %441 : vector<64x1xf32> to vector<64x64xf32>
    %464 = arith.mulf %430, %463 : vector<64x64xf32>
    %cst_94 = arith.constant dense<0.000000e+00> : vector<8x64xf32>
    %465 = tpu.matmul %462, %464, %cst_94 {dimension_numbers = #tpu.dot_dimension_numbers<[1], [0], [0], [1], [0, 0, 1, 1], [], []>} : vector<8x64xf32>, vector<64x64xf32>, vector<8x64xf32> -> vector<8x64xf32>
    %cst_95 = arith.constant dense<0.000000e+00> : vector<8x1xf32>
    %466 = tpu.matmul %462, %441, %cst_95 {dimension_numbers = #tpu.dot_dimension_numbers<[1], [0], [0], [1], [0, 0, 1, 1], [], []>} : vector<8x64xf32>, vector<64x1xf32>, vector<8x1xf32> -> vector<8x1xf32>
    %467 = tpu.reciprocal %466 {approx = true} : vector<8x1xf32> -> vector<8x1xf32>
    %468 = vector.broadcast %467 : vector<8x1xf32> to vector<8x64xf32>
    %469 = arith.mulf %465, %468 : vector<8x64xf32>
    %470 = math.tanh %469 : vector<8x64xf32>
    %c0_96 = arith.constant 0 : index
    %c0_97 = arith.constant 0 : index
    %471 = vector.load %arg9[%c0_96, %c0_97] : memref<64x5xf32, #tpu.memory_space<vmem>>, vector<64x5xf32>
    %cst_98 = arith.constant dense<0.000000e+00> : vector<8x5xf32>
    %472 = tpu.matmul %470, %471, %cst_98 {dimension_numbers = #tpu.dot_dimension_numbers<[1], [0], [0], [1], [0, 0, 1, 1], [], []>} : vector<8x64xf32>, vector<64x5xf32>, vector<8x5xf32> -> vector<8x5xf32>
    %c0_99 = arith.constant 0 : index
    %c0_100 = arith.constant 0 : index
    %473 = vector.load %arg10[%c0_99, %c0_100] : memref<1x5xf32, #tpu.memory_space<vmem>>, vector<1x5xf32>
    %474 = vector.broadcast %473 : vector<1x5xf32> to vector<8x5xf32>
    %475 = arith.addf %472, %474 : vector<8x5xf32>
    %c0_101 = arith.constant 0 : index
    %c0_102 = arith.constant 0 : index
    %476 = vector.load %arg11[%c0_101, %c0_102] : memref<8x5xf32, #tpu.memory_space<vmem>>, vector<8x5xf32>
    tpu.vector_store %arg11[%c0_101, %c0_102], %475 {strides = array<i32>} : memref<8x5xf32, #tpu.memory_space<vmem>>, vector<8x5xf32>,
    return
  }
}

</mosaic_0001>

<llo_original>
// kernel: attention_model_forward.1
$region0: #{attention_model_forward.1}
  #allocation0 [shape = 'u32[]', space=smem, size = 0x4, offset = 0x4, fixed_abs, tag = 'smem constant byte address 0x4 - core index']
  #allocation1 [shape = 'u32[72,128]{1,0:T(1,128)}', space=vmem, size = 0x9000, scoped, tag = 'internal scratch']
  #allocation2 [shape = 'f32[64,64]{1,0:T(8,128)}', space=vmem, size = 0x8000, scoped, tag = 'scratch operand']
  #allocation3 [shape = 'f32[64,64]{1,0:T(8,128)}', space=vmem, size = 0x8000, scoped, tag = 'scratch operand']
  #allocation4 [shape = 'f32[1,1]{1,0:T(1,128)S(6)}', space=smem, size = 0x200, scoped, tag = 'scoped memory for attention_model_forward.1']
  %s0 = inlined_call_operand.vmem [shape: f32[64,32], index: 0, kind: input, shape index: {}]
  %s1 = inlined_call_operand.vmem [shape: f32[32,256], index: 1, kind: input, shape index: {}]
  %s2 = inlined_call_operand.vmem [shape: f32[64,256], index: 2, kind: input, shape index: {}]
  %s3 = inlined_call_operand.vmem [shape: f32[1,256], index: 3, kind: input, shape index: {}]
  %s4 = inlined_call_operand.vmem [shape: f32[64,256], index: 4, kind: input, shape index: {}]
  %s5 = inlined_call_operand.hbm [shape: f32[64,256], index: 5, kind: input, shape index: {}]
  %s6 = inlined_call_operand.vmem [shape: f32[1,256], index: 6, kind: input, shape index: {}]
  %s7 = inlined_call_operand.vmem [shape: f32[64,1], index: 7, kind: input, shape index: {}]
  %s8 = inlined_call_operand.<no memory space> [shape: f32[1,1], index: 8, kind: input, shape index: {}]
  %s9 = inlined_call_operand.vmem [shape: f32[64,5], index: 9, kind: input, shape index: {}]
  %s10 = inlined_call_operand.vmem [shape: f32[1,5], index: 10, kind: input, shape index: {}]
  %s11 = inlined_call_operand.vmem [shape: f32[8,5], index: 11, kind: output, shape index: {}]
  %s12 = sld [smem:[#allocation0]]
  $region58: #{attention_model_forward.1} parent=0
    _
  %s14 = ssub.s32 1, %s12
  %s15 = scalar_select 0, %s14, %s12
  %16 = sst [smem:[#allocation4]] %s8
  $region1: #{attention_model_forward.1} parent=0
    #allocation5 [shape = 'u8[65536]{0}', space=vmem, size = 0x10000, scoped, tag = 'input window, operand 5, single buffered']
    #allocation6 [shape = 's32[1]{0}', space=sflag, size = 0x4, scoped, tag = 'scoped memory for attention_model_forward.1']
    %17 = vsyncpa [#allocation6], 0
    // Predicated region
    $region2: #{attention_model_forward.1} parent=1 // pred_check
      _
    $region3: #{attention_model_forward.1} parent=1 // pred_check_branch
      %19 = sbr.rel (0) target = $region5
    $region4: #{attention_model_forward.1} parent=1 // pred_region
      _
    $region5: #{attention_model_forward.1} parent=1 // pred_fallthru
      _
    // Predicated region
    $region6: #{attention_model_forward.1} parent=1 // pred_check
      _
    $region7: #{attention_model_forward.1} parent=1 // pred_check_branch
      %21 = sbr.rel (0) target = $region9
    $region8: #{attention_model_forward.1} parent=1 // pred_region
      _
    $region9: #{attention_model_forward.1} parent=1 // pred_fallthru
      _
    // Predicated region
    $region10: #{attention_model_forward.1} parent=1 // pred_check
      _
    $region11: #{attention_model_forward.1} parent=1 // pred_check_branch
      %23 = sbr.rel (0) target = $region13
    $region12: #{attention_model_forward.1} parent=1 // pred_region
      _
    $region13: #{attention_model_forward.1} parent=1 // pred_fallthru
      _
    // Predicated region
    $region14: #{attention_model_forward.1} parent=1 // pred_check
      _
    $region15: #{attention_model_forward.1} parent=1 // pred_check_branch
      %25 = sbr.rel (0) target = $region17
    $region16: #{attention_model_forward.1} parent=1 // pred_region
      _
    $region17: #{attention_model_forward.1} parent=1 // pred_fallthru
      _
    // Predicated region
    $region18: #{attention_model_forward.1} parent=1 // pred_check
      _
    $region19: #{attention_model_forward.1} parent=1 // pred_check_branch
      %27 = sbr.rel (0) target = $region21
    $region20: #{attention_model_forward.1} parent=1 // pred_region
      _
    $region21: #{attention_model_forward.1} parent=1 // pred_fallthru
      _
    // Predicated region
    $region22: #{attention_model_forward.1} parent=1 // pred_check
      _
    $region23: #{attention_model_forward.1} parent=1 // pred_check_branch
      %29 = sbr.rel (0) target = $region25
    $region24: #{attention_model_forward.1} parent=1 // pred_region
      %31 = vsyncadd [#allocation6], 0
      %s32 = sshll.u32 %s5, 4
      %s33 = int_to_ptr.hbm [resolvable:$true] %s32
      %s34 = sshll.u32 [#allocation5], 4
      %s35 = int_to_ptr.vmem [resolvable:$true] %s34
      %40 = dma.hbm_to_vmem [thread:$0]  %s33, 2048, %s35, [#allocation6], 256, 256, 16
    $region25: #{attention_model_forward.1} parent=1 // pred_fallthru
      _
    // Predicated region
    $region26: #{attention_model_forward.1} parent=1 // pred_check
      _
    $region27: #{attention_model_forward.1} parent=1 // pred_check_branch
      %42 = sbr.rel (0) target = $region29
    $region28: #{attention_model_forward.1} parent=1 // pred_region
      _
    $region29: #{attention_model_forward.1} parent=1 // pred_fallthru
      _
    // Predicated region
    $region30: #{attention_model_forward.1} parent=1 // pred_check
      _
    $region31: #{attention_model_forward.1} parent=1 // pred_check_branch
      %44 = sbr.rel (0) target = $region33
    $region32: #{attention_model_forward.1} parent=1 // pred_region
      _
    $region33: #{attention_model_forward.1} parent=1 // pred_fallthru
      _
    // Predicated region
    $region34: #{attention_model_forward.1} parent=1 // pred_check
      _
    $region35: #{attention_model_forward.1} parent=1 // pred_check_branch
      %46 = sbr.rel (0) target = $region37
    $region36: #{attention_model_forward.1} parent=1 // pred_region
      _
    $region37: #{attention_model_forward.1} parent=1 // pred_fallthru
      _
    // Predicated region
    $region38: #{attention_model_forward.1} parent=1 // pred_check
      _
    $region39: #{attention_model_forward.1} parent=1 // pred_check_branch
      %48 = sbr.rel (0) target = $region41
    $region40: #{attention_model_forward.1} parent=1 // pred_region
      _
    $region41: #{attention_model_forward.1} parent=1 // pred_fallthru
      _
    // Predicated region
    $region42: #{attention_model_forward.1} parent=1 // pred_check
      _
    $region43: #{attention_model_forward.1} parent=1 // pred_check_branch
      %50 = sbr.rel (0) target = $region45
    $region44: #{attention_model_forward.1} parent=1 // pred_region
      _
    $region45: #{attention_model_forward.1} parent=1 // pred_fallthru
      _
    // Predicated region
    $region46: #{attention_model_forward.1} parent=1 // pred_check
      _
    $region47: #{attention_model_forward.1} parent=1 // pred_check_branch
      %52 = sbr.rel (0) target = $region49
    $region48: #{attention_model_forward.1} parent=1 // pred_region
      %54 = dma.done [#allocation6], 2048
    $region49: #{attention_model_forward.1} parent=1 // pred_fallthru
      _
    %v56 = vlaneseq
    %v57 = vand.u32 %v56, 127
    %v58 = vadd.s32 %v57, 128
    %vm59 = vcmp.lt.s32.totalorder %v57, 0
    %v60 = vsub.s32 0, %v57
    %v61 = vsel %vm59, %v60, %v57
    %v62 = vshrl.u32 %v61, 6
    %v63 = vand.u32 %v61, 63
    %v64 = vsub.s32 0, %v63
    %v65 = vsel %vm59, %v64, %v63
    %vm66 = vcmp.lt.s32.totalorder %v58, 0
    %v67 = vsub.s32 0, %v58
    %v68 = vsel %vm66, %v67, %v58
    %v69 = vshrl.u32 %v68, 6
    %v70 = vand.u32 %v68, 63
    %v71 = vsub.s32 0, %v70
    %v72 = vsel %vm66, %v71, %v70
    %vm73 = vcmp.ne.s32.totalorder %v65, 0
    %vm74 = vcmp.ne.s32.totalorder %v72, 0
    %vm75 = vcmp.lt.s32.totalorder %v65, 0
    %vm76 = vcmp.lt.s32.totalorder %v72, 0
    %vm77 = vmand %vm75, %vm73
    %vm78 = vmand %vm76, %vm74
    %v79 = vadd.s32 %v65, 64
    %v80 = vadd.s32 %v72, 64
    %v81 = vsel %vm77, %v79, %v65
    %v82 = vsel %vm78, %v80, %v72
    %vm83 = vcmp.lt.s32.totalorder %v81, 32
    %vm84 = vcmp.lt.s32.totalorder %v82, 32
    %vm85 = vcmp.lt.s32.totalorder %v57, 32
    %v86 = vld [vmem:[%s0] sm:$0xff]
    %v87 = vld [vmem:[%s0 + $0x8] sm:$0xff]
    %v88 = vld [vmem:[%s0 + $0x10] sm:$0xff]
    %v89 = vld [vmem:[%s0 + $0x18] sm:$0xff]
    %v90 = vld [vmem:[%s0 + $0x20] sm:$0xff]
    %v91 = vld [vmem:[%s0 + $0x28] sm:$0xff]
    %v92 = vld [vmem:[%s0 + $0x30] sm:$0xff]
    %v93 = vld [vmem:[%s0 + $0x38] sm:$0xff]
    %v94 = vpack.c.bf16 %v87, %v86
    %v95 = vpack.c.bf16 %v89, %v88
    %v96 = vpack.c.bf16 %v91, %v90
    %v97 = vpack.c.bf16 %v93, %v92
    %v98 = vld [vmem:[%s1] sm:$0xff]
    %v99 = vld [vmem:[%s1 + $0x8] sm:$0xff]
    %v100 = vld [vmem:[%s1 + $0x10] sm:$0xff]
    %v101 = vld [vmem:[%s1 + $0x18] sm:$0xff]
    %v102 = vld [vmem:[%s1 + $0x20] sm:$0xff]
    %v103 = vld [vmem:[%s1 + $0x28] sm:$0xff]
    %v104 = vld [vmem:[%s1 + $0x30] sm:$0xff]
    %v105 = vld [vmem:[%s1 + $0x38] sm:$0xff]
    %v106 = vpack.c.bf16 %v100, %v98
    %v107 = vpack.c.bf16 %v101, %v99
    %v108 = vpack.c.bf16 %v104, %v102
    %v109 = vpack.c.bf16 %v105, %v103
    %v110 = vld [vmem:[%s3] sm:$0x3]
    %v112 = vperm.slane %v110, 0
    %v113 = vperm.slane %v110, 1
    %vm116 = vcmask 261120
    %v118 = vsel %vm116, %v94, 0
    %v121 = vsel %vm116, %v95, 0
    %v124 = vsel %vm116, %v96, 0
    %v127 = vsel %vm116, %v97, 0
    %129 = vmatpush.bf16.msra.mxu0 0
    %130 = vmatpush.bf16.msra.mxu0 0
    %131 = vmatpush.bf16.msra.mxu0 0
    %132 = vmatpush.bf16.msra.mxu0 0
    %133 = vmatpush.bf16.msra.mxu0 0
    %134 = vmatpush.bf16.msra.mxu0 0
    %135 = vmatpush.bf16.msra.mxu0 %v108
    %136 = vmatpush.bf16.msra.mxu0 %v106
    %137 = vmatmul.bf16.gmra.mxu0 %v118
    %v138 = vpop.f32.mrf.mxu0
    %v139 = vadd.f32 %v112, %v138
    %v140 = vpop.f32.mrf.mxu0
    %v141 = vadd.f32 %v112, %v140
    %142 = vmatmul.bf16.gmra.mxu0 %v121
    %v143 = vpop.f32.mrf.mxu0
    %v144 = vadd.f32 %v112, %v143
    %v145 = vpop.f32.mrf.mxu0
    %v146 = vadd.f32 %v112, %v145
    %147 = vmatmul.bf16.gmra.mxu0 %v124
    %v148 = vpop.f32.mrf.mxu0
    %v149 = vadd.f32 %v112, %v148
    %v150 = vpop.f32.mrf.mxu0
    %v151 = vadd.f32 %v112, %v150
    %152 = vmatmul.bf16.gmra.mxu0 %v127
    %v153 = vpop.f32.mrf.mxu0
    %v154 = vadd.f32 %v112, %v153
    %v155 = vpop.f32.mrf.mxu0
    %v156 = vadd.f32 %v112, %v155
    %157 = vdwg.mxu0
    %158 = vmatpush.bf16.msra.mxu0 0
    %159 = vmatpush.bf16.msra.mxu0 0
    %160 = vmatpush.bf16.msra.mxu0 0
    %161 = vmatpush.bf16.msra.mxu0 0
    %162 = vmatpush.bf16.msra.mxu0 0
    %163 = vmatpush.bf16.msra.mxu0 0
    %164 = vmatpush.bf16.msra.mxu0 %v109
    %165 = vmatpush.bf16.msra.mxu0 %v107
    %166 = vmatmul.bf16.gmra.mxu0 %v118
    %v167 = vpop.f32.mrf.mxu0
    %v168 = vadd.f32 %v113, %v167
    %v169 = vpop.f32.mrf.mxu0
    %v170 = vadd.f32 %v113, %v169
    %171 = vmatmul.bf16.gmra.mxu0 %v121
    %v172 = vpop.f32.mrf.mxu0
    %v173 = vadd.f32 %v113, %v172
    %v174 = vpop.f32.mrf.mxu0
    %v175 = vadd.f32 %v113, %v174
    %176 = vmatmul.bf16.gmra.mxu0 %v124
    %v177 = vpop.f32.mrf.mxu0
    %v178 = vadd.f32 %v113, %v177
    %v179 = vpop.f32.mrf.mxu0
    %v180 = vadd.f32 %v113, %v179
    %181 = vmatmul.bf16.gmra.mxu0 %v127
    %v182 = vpop.f32.mrf.mxu0
    %v183 = vadd.f32 %v113, %v182
    %v184 = vpop.f32.mrf.mxu0
    %v185 = vadd.f32 %v113, %v184
    %186 = vdwg.mxu0
    %v187 = vsel %vm83, 1, 0
    %v188 = vsel %vm84, 1, 0
    %vm189 = vcmp.eq.s32.totalorder %v187, 1
    %vm190 = vcmp.eq.s32.totalorder %v188, 1
    %v191 = vsel %vm189, %v139, %v156
    %v192 = vsel %vm190, %v168, %v185
    %v193 = vsel %vm189, %v141, %v154
    %v194 = vsel %vm190, %v170, %v183
    %v195 = vsel %vm189, %v144, %v151
    %v196 = vsel %vm190, %v173, %v180
    %v197 = vsel %vm189, %v146, %v149
    %v198 = vsel %vm190, %v175, %v178
    %v199 = vsel %vm189, %v149, %v146
    %v200 = vsel %vm190, %v178, %v175
    %v201 = vsel %vm189, %v151, %v144
    %v202 = vsel %vm190, %v180, %v173
    %v203 = vsel %vm189, %v154, %v141
    %v204 = vsel %vm190, %v183, %v170
    %v205 = vsel %vm189, %v156, %v139
    %v206 = vsel %vm190, %v185, %v168
    %v207 = vld [vmem:[%s2] sm:$0xff]
    %v208 = vld [vmem:[%s2 + $0x8] sm:$0xff]
    %v209 = vld [vmem:[%s2 + $0x10] sm:$0xff]
    %v210 = vld [vmem:[%s2 + $0x18] sm:$0xff]
    %v211 = vld [vmem:[%s2 + $0x20] sm:$0xff]
    %v212 = vld [vmem:[%s2 + $0x28] sm:$0xff]
    %v213 = vld [vmem:[%s2 + $0x30] sm:$0xff]
    %v214 = vld [vmem:[%s2 + $0x38] sm:$0xff]
    %v215 = vld [vmem:[%s2 + $0x40] sm:$0xff]
    %v216 = vld [vmem:[%s2 + $0x48] sm:$0xff]
    %v217 = vld [vmem:[%s2 + $0x50] sm:$0xff]
    %v218 = vld [vmem:[%s2 + $0x58] sm:$0xff]
    %v219 = vld [vmem:[%s2 + $0x60] sm:$0xff]
    %v220 = vld [vmem:[%s2 + $0x68] sm:$0xff]
    %v221 = vld [vmem:[%s2 + $0x70] sm:$0xff]
    %v222 = vld [vmem:[%s2 + $0x78] sm:$0xff]
    %v223 = vpack.c.bf16 %v209, %v207
    %v224 = vpack.c.bf16 %v210, %v208
    %v225 = vpack.c.bf16 %v213, %v211
    %v226 = vpack.c.bf16 %v214, %v212
    %v227 = vpack.c.bf16 %v217, %v215
    %v228 = vpack.c.bf16 %v218, %v216
    %v229 = vpack.c.bf16 %v221, %v219
    %v230 = vpack.c.bf16 %v222, %v220
    %vm231 = vcmask 523264
    %v233 = vsel %vm231, 0, 0
    %235 = vmatpush.bf16.msra.mxu0 0
    %236 = vmatpush.bf16.msra.mxu0 0
    %237 = vmatpush.bf16.msra.mxu0 0
    %238 = vmatpush.bf16.msra.mxu0 0
    %239 = vmatpush.bf16.msra.mxu0 %v229
    %240 = vmatpush.bf16.msra.mxu0 %v227
    %241 = vmatpush.bf16.msra.mxu0 %v225
    %242 = vmatpush.bf16.msra.mxu0 %v223
    %243 = vmatmul.bf16.gmra.mxu0 %v233
    %v244 = vpop.f32.mrf.mxu0
    %v245 = vadd.f32 0.0, %v244
    %v246 = vpop.f32.mrf.mxu0
    %247 = vdwg.mxu0
    %248 = vmatpush.bf16.msra.mxu0 0
    %249 = vmatpush.bf16.msra.mxu0 0
    %250 = vmatpush.bf16.msra.mxu0 0
    %251 = vmatpush.bf16.msra.mxu0 0
    %252 = vmatpush.bf16.msra.mxu0 %v230
    %253 = vmatpush.bf16.msra.mxu0 %v228
    %254 = vmatpush.bf16.msra.mxu0 %v226
    %255 = vmatpush.bf16.msra.mxu0 %v224
    %256 = vmatmul.bf16.gmra.mxu0 %v233
    %v257 = vpop.f32.mrf.mxu0
    %v258 = vadd.f32 0.0, %v257
    %v259 = vpop.f32.mrf.mxu0
    %260 = vdwg.mxu0
    %v261 = vadd.f32 %v191, %v245
    %v262 = vadd.f32 %v192, %v258
    %v263 = vxor.u32 %v261, 2147483648
    %v264 = vxor.u32 %v262, 2147483648
    %v265 = vmul.f32 %v263, 1.442695
    %v266 = vpow.pop %v265
    %v267 = vmul.f32 %v264, 1.442695
    %v268 = vpow.pop %v267
    %v269 = vadd.f32 %v266, 1.0
    %v270 = vadd.f32 %v268, 1.0
    %v271 = vrcp.pop %v269
    %v272 = vmul.f32 %v269, %v271
    %v273 = vsub.f32 1.0, %v272
    %v274 = vmul.f32 %v271, %v273
    %v275 = vadd.f32 %v271, %v274
    %vm276 = vweird.f32 %v269
    %vm277 = vweird.f32 %v271
    %vm278 = vmor %vm276, %vm277
    %v279 = vsel %vm278, %v271, %v275
    %v280 = vand.u32 2147483647, %v269
    %vm281 = vcmp.eq.f32.partialorder %v280, 8.507059e+37
    %v282 = vand.u32 %v269, 2147483648
    %v283 = vor.u32 1.1754944e-38, %v282
    %v284 = vsel %vm281, %v283, %v279
    %v285 = vmul.f32 1.0, %v284
    %v286 = vrcp.pop %v270
    %v287 = vmul.f32 %v270, %v286
    %v288 = vsub.f32 1.0, %v287
    %v289 = vmul.f32 %v286, %v288
    %v290 = vadd.f32 %v286, %v289
    %vm291 = vweird.f32 %v270
    %vm292 = vweird.f32 %v286
    %vm293 = vmor %vm291, %vm292
    %v294 = vsel %vm293, %v286, %v290
    %v295 = vand.u32 2147483647, %v270
    %vm296 = vcmp.eq.f32.partialorder %v295, 8.507059e+37
    %v297 = vand.u32 %v270, 2147483648
    %v298 = vor.u32 1.1754944e-38, %v297
    %v299 = vsel %vm296, %v298, %v294
    %v300 = vmul.f32 1.0, %v299
    %v301 = vtanh.pop %v262
    %v302 = vmul.f32 %v285, 0.0
    %304 = vrot.lane.b32.xlu0 %v301, 64
    %v305 = vpop.permute.xlu0 %304
    %v307 = vmul.f32 %v285, %v305
    %309 = vrot.lane.b32.xlu0 %v307, 64
    %v310 = vpop.permute.xlu0 %309
    %v312 = vadd.f32 %v302, %v310
    %v313 = vtanh.pop %v312
    %315 = vrot.lane.b32.xlu0 %v313, 64
    %v316 = vpop.permute.xlu0 %315
    %v318 = vmul.f32 %v300, %v316
    %319 = vst.msk [vmem:[#allocation2] sm:$0xff] %vm231, %v318
    %v320 = vpack.c.bf16 %v318, %v318
    %v322 = vsel %vm231, %v320, 0
    %324 = vmatpush.bf16.msra.mxu0 0
    %325 = vmatpush.bf16.msra.mxu0 0
    %326 = vmatpush.bf16.msra.mxu0 0
    %327 = vmatpush.bf16.msra.mxu0 0
    %328 = vmatpush.bf16.msra.mxu0 %v229
    %329 = vmatpush.bf16.msra.mxu0 %v227
    %330 = vmatpush.bf16.msra.mxu0 %v225
    %331 = vmatpush.bf16.msra.mxu0 %v223
    %332 = vmatmul.bf16.gmra.mxu0 %v322
    %v333 = vpop.f32.mrf.mxu0
    %v334 = vadd.f32 0.0, %v333
    %v335 = vpop.f32.mrf.mxu0
    %336 = vdwg.mxu0
    %337 = vmatpush.bf16.msra.mxu0 0
    %338 = vmatpush.bf16.msra.mxu0 0
    %339 = vmatpush.bf16.msra.mxu0 0
    %340 = vmatpush.bf16.msra.mxu0 0
    %341 = vmatpush.bf16.msra.mxu0 %v230
    %342 = vmatpush.bf16.msra.mxu0 %v228
    %343 = vmatpush.bf16.msra.mxu0 %v226
    %344 = vmatpush.bf16.msra.mxu0 %v224
    %345 = vmatmul.bf16.gmra.mxu0 %v322
    %v346 = vpop.f32.mrf.mxu0
    %v347 = vadd.f32 0.0, %v346
    %v348 = vpop.f32.mrf.mxu0
    %349 = vdwg.mxu0
    %v350 = vadd.f32 %v193, %v334
    %v351 = vadd.f32 %v194, %v347
    %v352 = vxor.u32 %v350, 2147483648
    %v353 = vxor.u32 %v351, 2147483648
    %v354 = vmul.f32 %v352, 1.442695
    %v355 = vpow.pop %v354
    %v356 = vmul.f32 %v353, 1.442695
    %v357 = vpow.pop %v356
    %v358 = vadd.f32 %v355, 1.0
    %v359 = vadd.f32 %v357, 1.0
    %v360 = vrcp.pop %v358
    %v361 = vmul.f32 %v358, %v360
    %v362 = vsub.f32 1.0, %v361
    %v363 = vmul.f32 %v360, %v362
    %v364 = vadd.f32 %v360, %v363
    %vm365 = vweird.f32 %v358
    %vm366 = vweird.f32 %v360
    %vm367 = vmor %vm365, %vm366
    %v368 = vsel %vm367, %v360, %v364
    %v369 = vand.u32 2147483647, %v358
    %vm370 = vcmp.eq.f32.partialorder %v369, 8.507059e+37
    %v371 = vand.u32 %v358, 2147483648
    %v372 = vor.u32 1.1754944e-38, %v371
    %v373 = vsel %vm370, %v372, %v368
    %v374 = vmul.f32 1.0, %v373
    %v375 = vrcp.pop %v359
    %v376 = vmul.f32 %v359, %v375
    %v377 = vsub.f32 1.0, %v376
    %v378 = vmul.f32 %v375, %v377
    %v379 = vadd.f32 %v375, %v378
    %vm380 = vweird.f32 %v359
    %vm381 = vweird.f32 %v375
    %vm382 = vmor %vm380, %vm381
    %v383 = vsel %vm382, %v375, %v379
    %v384 = vand.u32 2147483647, %v359
    %vm385 = vcmp.eq.f32.partialorder %v384, 8.507059e+37
    %v386 = vand.u32 %v359, 2147483648
    %v387 = vor.u32 1.1754944e-38, %v386
    %v388 = vsel %vm385, %v387, %v383
    %v389 = vmul.f32 1.0, %v388
    %v390 = vtanh.pop %v351
    %v391 = vmul.f32 %v374, %v312
    %393 = vrot.lane.b32.xlu0 %v390, 64
    %v394 = vpop.permute.xlu0 %393
    %v396 = vmul.f32 %v374, %v394
    %398 = vrot.lane.b32.xlu0 %v396, 64
    %v399 = vpop.permute.xlu0 %398
    %v401 = vadd.f32 %v391, %v399
    %v402 = vtanh.pop %v401
    %404 = vrot.lane.b32.xlu0 %v402, 64
    %v405 = vpop.permute.xlu0 %404
    %v407 = vmul.f32 %v389, %v405
    %408 = vst.msk [vmem:[#allocation2 + $0x8] sm:$0xff] %vm231, %v407
    %v409 = vpack.c.bf16 %v407, %v407
    %v411 = vsel %vm231, %v409, 0
    %413 = vmatpush.bf16.msra.mxu0 0
    %414 = vmatpush.bf16.msra.mxu0 0
    %415 = vmatpush.bf16.msra.mxu0 0
    %416 = vmatpush.bf16.msra.mxu0 0
    %417 = vmatpush.bf16.msra.mxu0 %v229
    %418 = vmatpush.bf16.msra.mxu0 %v227
    %419 = vmatpush.bf16.msra.mxu0 %v225
    %420 = vmatpush.bf16.msra.mxu0 %v223
    %421 = vmatmul.bf16.gmra.mxu0 %v411
    %v422 = vpop.f32.mrf.mxu0
    %v423 = vadd.f32 0.0, %v422
    %v424 = vpop.f32.mrf.mxu0
    %425 = vdwg.mxu0
    %426 = vmatpush.bf16.msra.mxu0 0
    %427 = vmatpush.bf16.msra.mxu0 0
    %428 = vmatpush.bf16.msra.mxu0 0
    %429 = vmatpush.bf16.msra.mxu0 0
    %430 = vmatpush.bf16.msra.mxu0 %v230
    %431 = vmatpush.bf16.msra.mxu0 %v228
    %432 = vmatpush.bf16.msra.mxu0 %v226
    %433 = vmatpush.bf16.msra.mxu0 %v224
    %434 = vmatmul.bf16.gmra.mxu0 %v411
    %v435 = vpop.f32.mrf.mxu0
    %v436 = vadd.f32 0.0, %v435
    %v437 = vpop.f32.mrf.mxu0
    %438 = vdwg.mxu0
    %v439 = vadd.f32 %v195, %v423
    %v440 = vadd.f32 %v196, %v436
    %v441 = vxor.u32 %v439, 2147483648
    %v442 = vxor.u32 %v440, 2147483648
    %v443 = vmul.f32 %v441, 1.442695
    %v444 = vpow.pop %v443
    %v445 = vmul.f32 %v442, 1.442695
    %v446 = vpow.pop %v445
    %v447 = vadd.f32 %v444, 1.0
    %v448 = vadd.f32 %v446, 1.0
    %v449 = vrcp.pop %v447
    %v450 = vmul.f32 %v447, %v449
    %v451 = vsub.f32 1.0, %v450
    %v452 = vmul.f32 %v449, %v451
    %v453 = vadd.f32 %v449, %v452
    %vm454 = vweird.f32 %v447
    %vm455 = vweird.f32 %v449
    %vm456 = vmor %vm454, %vm455
    %v457 = vsel %vm456, %v449, %v453
    %v458 = vand.u32 2147483647, %v447
    %vm459 = vcmp.eq.f32.partialorder %v458, 8.507059e+37
    %v460 = vand.u32 %v447, 2147483648
    %v461 = vor.u32 1.1754944e-38, %v460
    %v462 = vsel %vm459, %v461, %v457
    %v463 = vmul.f32 1.0, %v462
    %v464 = vrcp.pop %v448
    %v465 = vmul.f32 %v448, %v464
    %v466 = vsub.f32 1.0, %v465
    %v467 = vmul.f32 %v464, %v466
    %v468 = vadd.f32 %v464, %v467
    %vm469 = vweird.f32 %v448
    %vm470 = vweird.f32 %v464
    %vm471 = vmor %vm469, %vm470
    %v472 = vsel %vm471, %v464, %v468
    %v473 = vand.u32 2147483647, %v448
    %vm474 = vcmp.eq.f32.partialorder %v473, 8.507059e+37
    %v475 = vand.u32 %v448, 2147483648
    %v476 = vor.u32 1.1754944e-38, %v475
    %v477 = vsel %vm474, %v476, %v472
    %v478 = vmul.f32 1.0, %v477
    %v479 = vtanh.pop %v440
    %v480 = vmul.f32 %v463, %v401
    %482 = vrot.lane.b32.xlu0 %v479, 64
    %v483 = vpop.permute.xlu0 %482
    %v485 = vmul.f32 %v463, %v483
    %487 = vrot.lane.b32.xlu0 %v485, 64
    %v488 = vpop.permute.xlu0 %487
    %v490 = vadd.f32 %v480, %v488
    %v491 = vtanh.pop %v490
    %493 = vrot.lane.b32.xlu0 %v491, 64
    %v494 = vpop.permute.xlu0 %493
    %v496 = vmul.f32 %v478, %v494
    %497 = vst.msk [vmem:[#allocation2 + $0x10] sm:$0xff] %vm231, %v496
    %v498 = vpack.c.bf16 %v496, %v496
    %v500 = vsel %vm231, %v498, 0
    %502 = vmatpush.bf16.msra.mxu0 0
    %503 = vmatpush.bf16.msra.mxu0 0
    %504 = vmatpush.bf16.msra.mxu0 0
    %505 = vmatpush.bf16.msra.mxu0 0
    %506 = vmatpush.bf16.msra.mxu0 %v229
    %507 = vmatpush.bf16.msra.mxu0 %v227
    %508 = vmatpush.bf16.msra.mxu0 %v225
    %509 = vmatpush.bf16.msra.mxu0 %v223
    %510 = vmatmul.bf16.gmra.mxu0 %v500
    %v511 = vpop.f32.mrf.mxu0
    %v512 = vadd.f32 0.0, %v511
    %v513 = vpop.f32.mrf.mxu0
    %514 = vdwg.mxu0
    %515 = vmatpush.bf16.msra.mxu0 0
    %516 = vmatpush.bf16.msra.mxu0 0
    %517 = vmatpush.bf16.msra.mxu0 0
    %518 = vmatpush.bf16.msra.mxu0 0
    %519 = vmatpush.bf16.msra.mxu0 %v230
    %520 = vmatpush.bf16.msra.mxu0 %v228
    %521 = vmatpush.bf16.msra.mxu0 %v226
    %522 = vmatpush.bf16.msra.mxu0 %v224
    %523 = vmatmul.bf16.gmra.mxu0 %v500
    %v524 = vpop.f32.mrf.mxu0
    %v525 = vadd.f32 0.0, %v524
    %v526 = vpop.f32.mrf.mxu0
    %527 = vdwg.mxu0
    %v528 = vadd.f32 %v197, %v512
    %v529 = vadd.f32 %v198, %v525
    %v530 = vxor.u32 %v528, 2147483648
    %v531 = vxor.u32 %v529, 2147483648
    %v532 = vmul.f32 %v530, 1.442695
    %v533 = vpow.pop %v532
    %v534 = vmul.f32 %v531, 1.442695
    %v535 = vpow.pop %v534
    %v536 = vadd.f32 %v533, 1.0
    %v537 = vadd.f32 %v535, 1.0
    %v538 = vrcp.pop %v536
    %v539 = vmul.f32 %v536, %v538
    %v540 = vsub.f32 1.0, %v539
    %v541 = vmul.f32 %v538, %v540
    %v542 = vadd.f32 %v538, %v541
    %vm543 = vweird.f32 %v536
    %vm544 = vweird.f32 %v538
    %vm545 = vmor %vm543, %vm544
    %v546 = vsel %vm545, %v538, %v542
    %v547 = vand.u32 2147483647, %v536
    %vm548 = vcmp.eq.f32.partialorder %v547, 8.507059e+37
    %v549 = vand.u32 %v536, 2147483648
    %v550 = vor.u32 1.1754944e-38, %v549
    %v551 = vsel %vm548, %v550, %v546
    %v552 = vmul.f32 1.0, %v551
    %v553 = vrcp.pop %v537
    %v554 = vmul.f32 %v537, %v553
    %v555 = vsub.f32 1.0, %v554
    %v556 = vmul.f32 %v553, %v555
    %v557 = vadd.f32 %v553, %v556
    %vm558 = vweird.f32 %v537
    %vm559 = vweird.f32 %v553
    %vm560 = vmor %vm558, %vm559
    %v561 = vsel %vm560, %v553, %v557
    %v562 = vand.u32 2147483647, %v537
    %vm563 = vcmp.eq.f32.partialorder %v562, 8.507059e+37
    %v564 = vand.u32 %v537, 2147483648
    %v565 = vor.u32 1.1754944e-38, %v564
    %v566 = vsel %vm563, %v565, %v561
    %v567 = vmul.f32 1.0, %v566
    %v568 = vtanh.pop %v529
    %v569 = vmul.f32 %v552, %v490
    %571 = vrot.lane.b32.xlu0 %v568, 64
    %v572 = vpop.permute.xlu0 %571
    %v574 = vmul.f32 %v552, %v572
    %576 = vrot.lane.b32.xlu0 %v574, 64
    %v577 = vpop.permute.xlu0 %576
    %v579 = vadd.f32 %v569, %v577
    %v580 = vtanh.pop %v579
    %582 = vrot.lane.b32.xlu0 %v580, 64
    %v583 = vpop.permute.xlu0 %582
    %v585 = vmul.f32 %v567, %v583
    %586 = vst.msk [vmem:[#allocation2 + $0x18] sm:$0xff] %vm231, %v585
    %v587 = vpack.c.bf16 %v585, %v585
    %v589 = vsel %vm231, %v587, 0
    %591 = vmatpush.bf16.msra.mxu0 0
    %592 = vmatpush.bf16.msra.mxu0 0
    %593 = vmatpush.bf16.msra.mxu0 0
    %594 = vmatpush.bf16.msra.mxu0 0
    %595 = vmatpush.bf16.msra.mxu0 %v229
    %596 = vmatpush.bf16.msra.mxu0 %v227
    %597 = vmatpush.bf16.msra.mxu0 %v225
    %598 = vmatpush.bf16.msra.mxu0 %v223
    %599 = vmatmul.bf16.gmra.mxu0 %v589
    %v600 = vpop.f32.mrf.mxu0
    %v601 = vadd.f32 0.0, %v600
    %v602 = vpop.f32.mrf.mxu0
    %603 = vdwg.mxu0
    %604 = vmatpush.bf16.msra.mxu0 0
    %605 = vmatpush.bf16.msra.mxu0 0
    %606 = vmatpush.bf16.msra.mxu0 0
    %607 = vmatpush.bf16.msra.mxu0 0
    %608 = vmatpush.bf16.msra.mxu0 %v230
    %609 = vmatpush.bf16.msra.mxu0 %v228
    %610 = vmatpush.bf16.msra.mxu0 %v226
    %611 = vmatpush.bf16.msra.mxu0 %v224
    %612 = vmatmul.bf16.gmra.mxu0 %v589
    %v613 = vpop.f32.mrf.mxu0
    %v614 = vadd.f32 0.0, %v613
    %v615 = vpop.f32.mrf.mxu0
    %616 = vdwg.mxu0
    %v617 = vadd.f32 %v199, %v601
    %v618 = vadd.f32 %v200, %v614
    %v619 = vxor.u32 %v617, 2147483648
    %v620 = vxor.u32 %v618, 2147483648
    %v621 = vmul.f32 %v619, 1.442695
    %v622 = vpow.pop %v621
    %v623 = vmul.f32 %v620, 1.442695
    %v624 = vpow.pop %v623
    %v625 = vadd.f32 %v622, 1.0
    %v626 = vadd.f32 %v624, 1.0
    %v627 = vrcp.pop %v625
    %v628 = vmul.f32 %v625, %v627
    %v629 = vsub.f32 1.0, %v628
    %v630 = vmul.f32 %v627, %v629
    %v631 = vadd.f32 %v627, %v630
    %vm632 = vweird.f32 %v625
    %vm633 = vweird.f32 %v627
    %vm634 = vmor %vm632, %vm633
    %v635 = vsel %vm634, %v627, %v631
    %v636 = vand.u32 2147483647, %v625
    %vm637 = vcmp.eq.f32.partialorder %v636, 8.507059e+37
    %v638 = vand.u32 %v625, 2147483648
    %v639 = vor.u32 1.1754944e-38, %v638
    %v640 = vsel %vm637, %v639, %v635
    %v641 = vmul.f32 1.0, %v640
    %v642 = vrcp.pop %v626
    %v643 = vmul.f32 %v626, %v642
    %v644 = vsub.f32 1.0, %v643
    %v645 = vmul.f32 %v642, %v644
    %v646 = vadd.f32 %v642, %v645
    %vm647 = vweird.f32 %v626
    %vm648 = vweird.f32 %v642
    %vm649 = vmor %vm647, %vm648
    %v650 = vsel %vm649, %v642, %v646
    %v651 = vand.u32 2147483647, %v626
    %vm652 = vcmp.eq.f32.partialorder %v651, 8.507059e+37
    %v653 = vand.u32 %v626, 2147483648
    %v654 = vor.u32 1.1754944e-38, %v653
    %v655 = vsel %vm652, %v654, %v650
    %v656 = vmul.f32 1.0, %v655
    %v657 = vtanh.pop %v618
    %v658 = vmul.f32 %v641, %v579
    %660 = vrot.lane.b32.xlu0 %v657, 64
    %v661 = vpop.permute.xlu0 %660
    %v663 = vmul.f32 %v641, %v661
    %665 = vrot.lane.b32.xlu0 %v663, 64
    %v666 = vpop.permute.xlu0 %665
    %v668 = vadd.f32 %v658, %v666
    %v669 = vtanh.pop %v668
    %671 = vrot.lane.b32.xlu0 %v669, 64
    %v672 = vpop.permute.xlu0 %671
    %v674 = vmul.f32 %v656, %v672
    %675 = vst.msk [vmem:[#allocation2 + $0x20] sm:$0xff] %vm231, %v674
    %v676 = vpack.c.bf16 %v674, %v674
    %v678 = vsel %vm231, %v676, 0
    %680 = vmatpush.bf16.msra.mxu0 0
    %681 = vmatpush.bf16.msra.mxu0 0
    %682 = vmatpush.bf16.msra.mxu0 0
    %683 = vmatpush.bf16.msra.mxu0 0
    %684 = vmatpush.bf16.msra.mxu0 %v229
    %685 = vmatpush.bf16.msra.mxu0 %v227
    %686 = vmatpush.bf16.msra.mxu0 %v225
    %687 = vmatpush.bf16.msra.mxu0 %v223
    %688 = vmatmul.bf16.gmra.mxu0 %v678
    %v689 = vpop.f32.mrf.mxu0
    %v690 = vadd.f32 0.0, %v689
    %v691 = vpop.f32.mrf.mxu0
    %692 = vdwg.mxu0
    %693 = vmatpush.bf16.msra.mxu0 0
    %694 = vmatpush.bf16.msra.mxu0 0
    %695 = vmatpush.bf16.msra.mxu0 0
    %696 = vmatpush.bf16.msra.mxu0 0
    %697 = vmatpush.bf16.msra.mxu0 %v230
    %698 = vmatpush.bf16.msra.mxu0 %v228
    %699 = vmatpush.bf16.msra.mxu0 %v226
    %700 = vmatpush.bf16.msra.mxu0 %v224
    %701 = vmatmul.bf16.gmra.mxu0 %v678
    %v702 = vpop.f32.mrf.mxu0
    %v703 = vadd.f32 0.0, %v702
    %v704 = vpop.f32.mrf.mxu0
    %705 = vdwg.mxu0
    %v706 = vadd.f32 %v201, %v690
    %v707 = vadd.f32 %v202, %v703
    %v708 = vxor.u32 %v706, 2147483648
    %v709 = vxor.u32 %v707, 2147483648
    %v710 = vmul.f32 %v708, 1.442695
    %v711 = vpow.pop %v710
    %v712 = vmul.f32 %v709, 1.442695
    %v713 = vpow.pop %v712
    %v714 = vadd.f32 %v711, 1.0
    %v715 = vadd.f32 %v713, 1.0
    %v716 = vrcp.pop %v714
    %v717 = vmul.f32 %v714, %v716
    %v718 = vsub.f32 1.0, %v717
    %v719 = vmul.f32 %v716, %v718
    %v720 = vadd.f32 %v716, %v719
    %vm721 = vweird.f32 %v714
    %vm722 = vweird.f32 %v716
    %vm723 = vmor %vm721, %vm722
    %v724 = vsel %vm723, %v716, %v720
    %v725 = vand.u32 2147483647, %v714
    %vm726 = vcmp.eq.f32.partialorder %v725, 8.507059e+37
    %v727 = vand.u32 %v714, 2147483648
    %v728 = vor.u32 1.1754944e-38, %v727
    %v729 = vsel %vm726, %v728, %v724
    %v730 = vmul.f32 1.0, %v729
    %v731 = vrcp.pop %v715
    %v732 = vmul.f32 %v715, %v731
    %v733 = vsub.f32 1.0, %v732
    %v734 = vmul.f32 %v731, %v733
    %v735 = vadd.f32 %v731, %v734
    %vm736 = vweird.f32 %v715
    %vm737 = vweird.f32 %v731
    %vm738 = vmor %vm736, %vm737
    %v739 = vsel %vm738, %v731, %v735
    %v740 = vand.u32 2147483647, %v715
    %vm741 = vcmp.eq.f32.partialorder %v740, 8.507059e+37
    %v742 = vand.u32 %v715, 2147483648
    %v743 = vor.u32 1.1754944e-38, %v742
    %v744 = vsel %vm741, %v743, %v739
    %v745 = vmul.f32 1.0, %v744
    %v746 = vtanh.pop %v707
    %v747 = vmul.f32 %v730, %v668
    %749 = vrot.lane.b32.xlu0 %v746, 64
    %v750 = vpop.permute.xlu0 %749
    %v752 = vmul.f32 %v730, %v750
    %754 = vrot.lane.b32.xlu0 %v752, 64
    %v755 = vpop.permute.xlu0 %754
    %v757 = vadd.f32 %v747, %v755
    %v758 = vtanh.pop %v757
    %760 = vrot.lane.b32.xlu0 %v758, 64
    %v761 = vpop.permute.xlu0 %760
    %v763 = vmul.f32 %v745, %v761
    %764 = vst.msk [vmem:[#allocation2 + $0x28] sm:$0xff] %vm231, %v763
    %v765 = vpack.c.bf16 %v763, %v763
    %v767 = vsel %vm231, %v765, 0
    %769 = vmatpush.bf16.msra.mxu0 0
    %770 = vmatpush.bf16.msra.mxu0 0
    %771 = vmatpush.bf16.msra.mxu0 0
    %772 = vmatpush.bf16.msra.mxu0 0
    %773 = vmatpush.bf16.msra.mxu0 %v229
    %774 = vmatpush.bf16.msra.mxu0 %v227
    %775 = vmatpush.bf16.msra.mxu0 %v225
    %776 = vmatpush.bf16.msra.mxu0 %v223
    %777 = vmatmul.bf16.gmra.mxu0 %v767
    %v778 = vpop.f32.mrf.mxu0
    %v779 = vadd.f32 0.0, %v778
    %v780 = vpop.f32.mrf.mxu0
    %781 = vdwg.mxu0
    %782 = vmatpush.bf16.msra.mxu0 0
    %783 = vmatpush.bf16.msra.mxu0 0
    %784 = vmatpush.bf16.msra.mxu0 0
    %785 = vmatpush.bf16.msra.mxu0 0
    %786 = vmatpush.bf16.msra.mxu0 %v230
    %787 = vmatpush.bf16.msra.mxu0 %v228
    %788 = vmatpush.bf16.msra.mxu0 %v226
    %789 = vmatpush.bf16.msra.mxu0 %v224
    %790 = vmatmul.bf16.gmra.mxu0 %v767
    %v791 = vpop.f32.mrf.mxu0
    %v792 = vadd.f32 0.0, %v791
    %v793 = vpop.f32.mrf.mxu0
    %794 = vdwg.mxu0
    %v795 = vadd.f32 %v203, %v779
    %v796 = vadd.f32 %v204, %v792
    %v797 = vxor.u32 %v795, 2147483648
    %v798 = vxor.u32 %v796, 2147483648
    %v799 = vmul.f32 %v797, 1.442695
    %v800 = vpow.pop %v799
    %v801 = vmul.f32 %v798, 1.442695
    %v802 = vpow.pop %v801
    %v803 = vadd.f32 %v800, 1.0
    %v804 = vadd.f32 %v802, 1.0
    %v805 = vrcp.pop %v803
    %v806 = vmul.f32 %v803, %v805
    %v807 = vsub.f32 1.0, %v806
    %v808 = vmul.f32 %v805, %v807
    %v809 = vadd.f32 %v805, %v808
    %vm810 = vweird.f32 %v803
    %vm811 = vweird.f32 %v805
    %vm812 = vmor %vm810, %vm811
    %v813 = vsel %vm812, %v805, %v809
    %v814 = vand.u32 2147483647, %v803
    %vm815 = vcmp.eq.f32.partialorder %v814, 8.507059e+37
    %v816 = vand.u32 %v803, 2147483648
    %v817 = vor.u32 1.1754944e-38, %v816
    %v818 = vsel %vm815, %v817, %v813
    %v819 = vmul.f32 1.0, %v818
    %v820 = vrcp.pop %v804
    %v821 = vmul.f32 %v804, %v820
    %v822 = vsub.f32 1.0, %v821
    %v823 = vmul.f32 %v820, %v822
    %v824 = vadd.f32 %v820, %v823
    %vm825 = vweird.f32 %v804
    %vm826 = vweird.f32 %v820
    %vm827 = vmor %vm825, %vm826
    %v828 = vsel %vm827, %v820, %v824
    %v829 = vand.u32 2147483647, %v804
    %vm830 = vcmp.eq.f32.partialorder %v829, 8.507059e+37
    %v831 = vand.u32 %v804, 2147483648
    %v832 = vor.u32 1.1754944e-38, %v831
    %v833 = vsel %vm830, %v832, %v828
    %v834 = vmul.f32 1.0, %v833
    %v835 = vtanh.pop %v796
    %v836 = vmul.f32 %v819, %v757
    %838 = vrot.lane.b32.xlu0 %v835, 64
    %v839 = vpop.permute.xlu0 %838
    %v841 = vmul.f32 %v819, %v839
    %843 = vrot.lane.b32.xlu0 %v841, 64
    %v844 = vpop.permute.xlu0 %843
    %v846 = vadd.f32 %v836, %v844
    %v847 = vtanh.pop %v846
    %849 = vrot.lane.b32.xlu0 %v847, 64
    %v850 = vpop.permute.xlu0 %849
    %v852 = vmul.f32 %v834, %v850
    %853 = vst.msk [vmem:[#allocation2 + $0x30] sm:$0xff] %vm231, %v852
    %v854 = vpack.c.bf16 %v852, %v852
    %v856 = vsel %vm231, %v854, 0
    %858 = vmatpush.bf16.msra.mxu0 0
    %859 = vmatpush.bf16.msra.mxu0 0
    %860 = vmatpush.bf16.msra.mxu0 0
    %861 = vmatpush.bf16.msra.mxu0 0
    %862 = vmatpush.bf16.msra.mxu0 %v229
    %863 = vmatpush.bf16.msra.mxu0 %v227
    %864 = vmatpush.bf16.msra.mxu0 %v225
    %865 = vmatpush.bf16.msra.mxu0 %v223
    %866 = vmatmul.bf16.gmra.mxu0 %v856
    %v867 = vpop.f32.mrf.mxu0
    %v868 = vadd.f32 0.0, %v867
    %v869 = vpop.f32.mrf.mxu0
    %870 = vdwg.mxu0
    %871 = vmatpush.bf16.msra.mxu0 0
    %872 = vmatpush.bf16.msra.mxu0 0
    %873 = vmatpush.bf16.msra.mxu0 0
    %874 = vmatpush.bf16.msra.mxu0 0
    %875 = vmatpush.bf16.msra.mxu0 %v230
    %876 = vmatpush.bf16.msra.mxu0 %v228
    %877 = vmatpush.bf16.msra.mxu0 %v226
    %878 = vmatpush.bf16.msra.mxu0 %v224
    %879 = vmatmul.bf16.gmra.mxu0 %v856
    %v880 = vpop.f32.mrf.mxu0
    %v881 = vadd.f32 0.0, %v880
    %v882 = vpop.f32.mrf.mxu0
    %883 = vdwg.mxu0
    %v884 = vadd.f32 %v205, %v868
    %v885 = vadd.f32 %v206, %v881
    %v886 = vxor.u32 %v884, 2147483648
    %v887 = vxor.u32 %v885, 2147483648
    %v888 = vmul.f32 %v886, 1.442695
    %v889 = vpow.pop %v888
    %v890 = vmul.f32 %v887, 1.442695
    %v891 = vpow.pop %v890
    %v892 = vadd.f32 %v889, 1.0
    %v893 = vadd.f32 %v891, 1.0
    %v894 = vrcp.pop %v892
    %v895 = vmul.f32 %v892, %v894
    %v896 = vsub.f32 1.0, %v895
    %v897 = vmul.f32 %v894, %v896
    %v898 = vadd.f32 %v894, %v897
    %vm899 = vweird.f32 %v892
    %vm900 = vweird.f32 %v894
    %vm901 = vmor %vm899, %vm900
    %v902 = vsel %vm901, %v894, %v898
    %v903 = vand.u32 2147483647, %v892
    %vm904 = vcmp.eq.f32.partialorder %v903, 8.507059e+37
    %v905 = vand.u32 %v892, 2147483648
    %v906 = vor.u32 1.1754944e-38, %v905
    %v907 = vsel %vm904, %v906, %v902
    %v908 = vmul.f32 1.0, %v907
    %v909 = vrcp.pop %v893
    %v910 = vmul.f32 %v893, %v909
    %v911 = vsub.f32 1.0, %v910
    %v912 = vmul.f32 %v909, %v911
    %v913 = vadd.f32 %v909, %v912
    %vm914 = vweird.f32 %v893
    %vm915 = vweird.f32 %v909
    %vm916 = vmor %vm914, %vm915
    %v917 = vsel %vm916, %v909, %v913
    %v918 = vand.u32 2147483647, %v893
    %vm919 = vcmp.eq.f32.partialorder %v918, 8.507059e+37
    %v920 = vand.u32 %v893, 2147483648
    %v921 = vor.u32 1.1754944e-38, %v920
    %v922 = vsel %vm919, %v921, %v917
    %v923 = vmul.f32 1.0, %v922
    %v924 = vtanh.pop %v885
    %v925 = vmul.f32 %v908, %v846
    %927 = vrot.lane.b32.xlu0 %v924, 64
    %v928 = vpop.permute.xlu0 %927
    %v930 = vmul.f32 %v908, %v928
    %932 = vrot.lane.b32.xlu0 %v930, 64
    %v933 = vpop.permute.xlu0 %932
    %v935 = vadd.f32 %v925, %v933
    %v936 = vtanh.pop %v935
    %938 = vrot.lane.b32.xlu0 %v936, 64
    %v939 = vpop.permute.xlu0 %938
    %v941 = vmul.f32 %v923, %v939
    %942 = vst.msk [vmem:[#allocation2 + $0x38] sm:$0xff] %vm231, %v941
    %v943 = vld [vmem:[#allocation2] sm:$0xff]
    %v944 = vld [vmem:[#allocation2 + $0x8] sm:$0xff]
    %v945 = vld [vmem:[#allocation2 + $0x10] sm:$0xff]
    %v946 = vld [vmem:[#allocation2 + $0x18] sm:$0xff]
    %v947 = vld [vmem:[#allocation2 + $0x20] sm:$0xff]
    %v948 = vld [vmem:[#allocation2 + $0x28] sm:$0xff]
    %v949 = vld [vmem:[#allocation2 + $0x30] sm:$0xff]
    %v950 = vld [vmem:[#allocation2 + $0x38] sm:$0xff]
    %v951 = vsel %vm85, 1, 0
    %vm952 = vcmp.eq.s32.totalorder %v951, 1
    %v953 = vsel %vm952, %v943, %v950
    %v954 = vsel %vm952, %v944, %v949
    %v955 = vsel %vm952, %v945, %v948
    %v956 = vsel %vm952, %v946, %v947
    %v957 = vsel %vm952, %v947, %v946
    %v958 = vsel %vm952, %v948, %v945
    %v959 = vsel %vm952, %v949, %v944
    %v960 = vsel %vm952, %v950, %v943
    %v961 = vpack.c.bf16 %v954, %v953
    %v962 = vpack.c.bf16 %v956, %v955
    %v963 = vpack.c.bf16 %v958, %v957
    %v964 = vpack.c.bf16 %v960, %v959
    %v965 = vld [vmem:[%s4] sm:$0xff]
    %v966 = vld [vmem:[%s4 + $0x8] sm:$0xff]
    %v967 = vld [vmem:[%s4 + $0x10] sm:$0xff]
    %v968 = vld [vmem:[%s4 + $0x18] sm:$0xff]
    %v969 = vld [vmem:[%s4 + $0x20] sm:$0xff]
    %v970 = vld [vmem:[%s4 + $0x28] sm:$0xff]
    %v971 = vld [vmem:[%s4 + $0x30] sm:$0xff]
    %v972 = vld [vmem:[%s4 + $0x38] sm:$0xff]
    %v973 = vld [vmem:[%s4 + $0x40] sm:$0xff]
    %v974 = vld [vmem:[%s4 + $0x48] sm:$0xff]
    %v975 = vld [vmem:[%s4 + $0x50] sm:$0xff]
    %v976 = vld [vmem:[%s4 + $0x58] sm:$0xff]
    %v977 = vld [vmem:[%s4 + $0x60] sm:$0xff]
    %v978 = vld [vmem:[%s4 + $0x68] sm:$0xff]
    %v979 = vld [vmem:[%s4 + $0x70] sm:$0xff]
    %v980 = vld [vmem:[%s4 + $0x78] sm:$0xff]
    %v981 = vpack.c.bf16 %v967, %v965
    %v982 = vpack.c.bf16 %v968, %v966
    %v983 = vpack.c.bf16 %v971, %v969
    %v984 = vpack.c.bf16 %v972, %v970
    %v985 = vpack.c.bf16 %v975, %v973
    %v986 = vpack.c.bf16 %v976, %v974
    %v987 = vpack.c.bf16 %v979, %v977
    %v988 = vpack.c.bf16 %v980, %v978
    %v989 = vld [vmem:[%s6] sm:$0x3]
    %v991 = vperm.slane %v989, 0
    %v992 = vperm.slane %v989, 1
    %v996 = vsel %vm231, %v961, 0
    %v999 = vsel %vm231, %v962, 0
    %v1002 = vsel %vm231, %v963, 0
    %v1005 = vsel %vm231, %v964, 0
    %1007 = vmatpush.bf16.msra.mxu0 0
    %1008 = vmatpush.bf16.msra.mxu0 0
    %1009 = vmatpush.bf16.msra.mxu0 0
    %1010 = vmatpush.bf16.msra.mxu0 0
    %1011 = vmatpush.bf16.msra.mxu0 %v987
    %1012 = vmatpush.bf16.msra.mxu0 %v985
    %1013 = vmatpush.bf16.msra.mxu0 %v983
    %1014 = vmatpush.bf16.msra.mxu0 %v981
    %1015 = vmatmul.bf16.gmra.mxu0 %v996
    %v1016 = vpop.f32.mrf.mxu0
    %v1017 = vadd.f32 %v991, %v1016
    %v1018 = vpop.f32.mrf.mxu0
    %v1019 = vadd.f32 %v991, %v1018
    %1020 = vmatmul.bf16.gmra.mxu0 %v999
    %v1021 = vpop.f32.mrf.mxu0
    %v1022 = vadd.f32 %v991, %v1021
    %v1023 = vpop.f32.mrf.mxu0
    %v1024 = vadd.f32 %v991, %v1023
    %1025 = vmatmul.bf16.gmra.mxu0 %v1002
    %v1026 = vpop.f32.mrf.mxu0
    %v1027 = vadd.f32 %v991, %v1026
    %v1028 = vpop.f32.mrf.mxu0
    %v1029 = vadd.f32 %v991, %v1028
    %1030 = vmatmul.bf16.gmra.mxu0 %v1005
    %v1031 = vpop.f32.mrf.mxu0
    %v1032 = vadd.f32 %v991, %v1031
    %v1033 = vpop.f32.mrf.mxu0
    %v1034 = vadd.f32 %v991, %v1033
    %1035 = vdwg.mxu0
    %1036 = vmatpush.bf16.msra.mxu0 0
    %1037 = vmatpush.bf16.msra.mxu0 0
    %1038 = vmatpush.bf16.msra.mxu0 0
    %1039 = vmatpush.bf16.msra.mxu0 0
    %1040 = vmatpush.bf16.msra.mxu0 %v988
    %1041 = vmatpush.bf16.msra.mxu0 %v986
    %1042 = vmatpush.bf16.msra.mxu0 %v984
    %1043 = vmatpush.bf16.msra.mxu0 %v982
    %1044 = vmatmul.bf16.gmra.mxu0 %v996
    %v1045 = vpop.f32.mrf.mxu0
    %v1046 = vadd.f32 %v992, %v1045
    %v1047 = vpop.f32.mrf.mxu0
    %v1048 = vadd.f32 %v992, %v1047
    %1049 = vmatmul.bf16.gmra.mxu0 %v999
    %v1050 = vpop.f32.mrf.mxu0
    %v1051 = vadd.f32 %v992, %v1050
    %v1052 = vpop.f32.mrf.mxu0
    %v1053 = vadd.f32 %v992, %v1052
    %1054 = vmatmul.bf16.gmra.mxu0 %v1002
    %v1055 = vpop.f32.mrf.mxu0
    %v1056 = vadd.f32 %v992, %v1055
    %v1057 = vpop.f32.mrf.mxu0
    %v1058 = vadd.f32 %v992, %v1057
    %1059 = vmatmul.bf16.gmra.mxu0 %v1005
    %v1060 = vpop.f32.mrf.mxu0
    %v1061 = vadd.f32 %v992, %v1060
    %v1062 = vpop.f32.mrf.mxu0
    %v1063 = vadd.f32 %v992, %v1062
    %1064 = vdwg.mxu0
    %v1065 = vsel %vm189, %v1017, %v1034
    %v1066 = vsel %vm190, %v1046, %v1063
    %v1067 = vsel %vm189, %v1019, %v1032
    %v1068 = vsel %vm190, %v1048, %v1061
    %v1069 = vsel %vm189, %v1022, %v1029
    %v1070 = vsel %vm190, %v1051, %v1058
    %v1071 = vsel %vm189, %v1024, %v1027
    %v1072 = vsel %vm190, %v1053, %v1056
    %v1073 = vsel %vm189, %v1027, %v1024
    %v1074 = vsel %vm190, %v1056, %v1053
    %v1075 = vsel %vm189, %v1029, %v1022
    %v1076 = vsel %vm190, %v1058, %v1051
    %v1077 = vsel %vm189, %v1032, %v1019
    %v1078 = vsel %vm190, %v1061, %v1048
    %v1079 = vsel %vm189, %v1034, %v1017
    %v1080 = vsel %vm190, %v1063, %v1046
    %v1081 = vld [vmem:[#allocation5] sm:$0xff]
    %v1082 = vld [vmem:[#allocation5 + $0x8] sm:$0xff]
    %v1083 = vld [vmem:[#allocation5 + $0x10] sm:$0xff]
    %v1084 = vld [vmem:[#allocation5 + $0x18] sm:$0xff]
    %v1085 = vld [vmem:[#allocation5 + $0x20] sm:$0xff]
    %v1086 = vld [vmem:[#allocation5 + $0x28] sm:$0xff]
    %v1087 = vld [vmem:[#allocation5 + $0x30] sm:$0xff]
    %v1088 = vld [vmem:[#allocation5 + $0x38] sm:$0xff]
    %v1089 = vld [vmem:[#allocation5 + $0x40] sm:$0xff]
    %v1090 = vld [vmem:[#allocation5 + $0x48] sm:$0xff]
    %v1091 = vld [vmem:[#allocation5 + $0x50] sm:$0xff]
    %v1092 = vld [vmem:[#allocation5 + $0x58] sm:$0xff]
    %v1093 = vld [vmem:[#allocation5 + $0x60] sm:$0xff]
    %v1094 = vld [vmem:[#allocation5 + $0x68] sm:$0xff]
    %v1095 = vld [vmem:[#allocation5 + $0x70] sm:$0xff]
    %v1096 = vld [vmem:[#allocation5 + $0x78] sm:$0xff]
    %v1097 = vpack.c.bf16 %v1083, %v1081
    %v1098 = vpack.c.bf16 %v1084, %v1082
    %v1099 = vpack.c.bf16 %v1087, %v1085
    %v1100 = vpack.c.bf16 %v1088, %v1086
    %v1101 = vpack.c.bf16 %v1091, %v1089
    %v1102 = vpack.c.bf16 %v1092, %v1090
    %v1103 = vpack.c.bf16 %v1095, %v1093
    %v1104 = vpack.c.bf16 %v1096, %v1094
    %1105 = vmatpush.bf16.msra.mxu0 0
    %1106 = vmatpush.bf16.msra.mxu0 0
    %1107 = vmatpush.bf16.msra.mxu0 0
    %1108 = vmatpush.bf16.msra.mxu0 0
    %1109 = vmatpush.bf16.msra.mxu0 %v1103
    %1110 = vmatpush.bf16.msra.mxu0 %v1101
    %1111 = vmatpush.bf16.msra.mxu0 %v1099
    %1112 = vmatpush.bf16.msra.mxu0 %v1097
    %1113 = vmatmul.bf16.gmra.mxu0 %v233
    %v1114 = vpop.f32.mrf.mxu0
    %v1115 = vadd.f32 0.0, %v1114
    %v1116 = vpop.f32.mrf.mxu0
    %1117 = vdwg.mxu0
    %1118 = vmatpush.bf16.msra.mxu0 0
    %1119 = vmatpush.bf16.msra.mxu0 0
    %1120 = vmatpush.bf16.msra.mxu0 0
    %1121 = vmatpush.bf16.msra.mxu0 0
    %1122 = vmatpush.bf16.msra.mxu0 %v1104
    %1123 = vmatpush.bf16.msra.mxu0 %v1102
    %1124 = vmatpush.bf16.msra.mxu0 %v1100
    %1125 = vmatpush.bf16.msra.mxu0 %v1098
    %1126 = vmatmul.bf16.gmra.mxu0 %v233
    %v1127 = vpop.f32.mrf.mxu0
    %v1128 = vadd.f32 0.0, %v1127
    %v1129 = vpop.f32.mrf.mxu0
    %1130 = vdwg.mxu0
    %v1131 = vadd.f32 %v1065, %v1115
    %v1132 = vadd.f32 %v1066, %v1128
    %v1133 = vxor.u32 %v1131, 2147483648
    %v1134 = vxor.u32 %v1132, 2147483648
    %v1135 = vmul.f32 %v1133, 1.442695
    %v1136 = vpow.pop %v1135
    %v1137 = vmul.f32 %v1134, 1.442695
    %v1138 = vpow.pop %v1137
    %v1139 = vadd.f32 %v1136, 1.0
    %v1140 = vadd.f32 %v1138, 1.0
    %v1141 = vrcp.pop %v1139
    %v1142 = vmul.f32 %v1139, %v1141
    %v1143 = vsub.f32 1.0, %v1142
    %v1144 = vmul.f32 %v1141, %v1143
    %v1145 = vadd.f32 %v1141, %v1144
    %vm1146 = vweird.f32 %v1139
    %vm1147 = vweird.f32 %v1141
    %vm1148 = vmor %vm1146, %vm1147
    %v1149 = vsel %vm1148, %v1141, %v1145
    %v1150 = vand.u32 2147483647, %v1139
    %vm1151 = vcmp.eq.f32.partialorder %v1150, 8.507059e+37
    %v1152 = vand.u32 %v1139, 2147483648
    %v1153 = vor.u32 1.1754944e-38, %v1152
    %v1154 = vsel %vm1151, %v1153, %v1149
    %v1155 = vmul.f32 1.0, %v1154
    %v1156 = vrcp.pop %v1140
    %v1157 = vmul.f32 %v1140, %v1156
    %v1158 = vsub.f32 1.0, %v1157
    %v1159 = vmul.f32 %v1156, %v1158
    %v1160 = vadd.f32 %v1156, %v1159
    %vm1161 = vweird.f32 %v1140
    %vm1162 = vweird.f32 %v1156
    %vm1163 = vmor %vm1161, %vm1162
    %v1164 = vsel %vm1163, %v1156, %v1160
    %v1165 = vand.u32 2147483647, %v1140
    %vm1166 = vcmp.eq.f32.partialorder %v1165, 8.507059e+37
    %v1167 = vand.u32 %v1140, 2147483648
    %v1168 = vor.u32 1.1754944e-38, %v1167
    %v1169 = vsel %vm1166, %v1168, %v1164
    %v1170 = vmul.f32 1.0, %v1169
    %v1171 = vtanh.pop %v1132
    %v1172 = vmul.f32 %v1155, 0.0
    %1174 = vrot.lane.b32.xlu0 %v1171, 64
    %v1175 = vpop.permute.xlu0 %1174
    %v1177 = vmul.f32 %v1155, %v1175
    %1179 = vrot.lane.b32.xlu0 %v1177, 64
    %v1180 = vpop.permute.xlu0 %1179
    %v1182 = vadd.f32 %v1172, %v1180
    %v1183 = vtanh.pop %v1182
    %1185 = vrot.lane.b32.xlu0 %v1183, 64
    %v1186 = vpop.permute.xlu0 %1185
    %v1188 = vmul.f32 %v1170, %v1186
    %1189 = vst.msk [vmem:[#allocation3] sm:$0xff] %vm231, %v1188
    %v1190 = vpack.c.bf16 %v1188, %v1188
    %v1192 = vsel %vm231, %v1190, 0
    %1194 = vmatpush.bf16.msra.mxu0 0
    %1195 = vmatpush.bf16.msra.mxu0 0
    %1196 = vmatpush.bf16.msra.mxu0 0
    %1197 = vmatpush.bf16.msra.mxu0 0
    %1198 = vmatpush.bf16.msra.mxu0 %v1103
    %1199 = vmatpush.bf16.msra.mxu0 %v1101
    %1200 = vmatpush.bf16.msra.mxu0 %v1099
    %1201 = vmatpush.bf16.msra.mxu0 %v1097
    %1202 = vmatmul.bf16.gmra.mxu0 %v1192
    %v1203 = vpop.f32.mrf.mxu0
    %v1204 = vadd.f32 0.0, %v1203
    %v1205 = vpop.f32.mrf.mxu0
    %1206 = vdwg.mxu0
    %1207 = vmatpush.bf16.msra.mxu0 0
    %1208 = vmatpush.bf16.msra.mxu0 0
    %1209 = vmatpush.bf16.msra.mxu0 0
    %1210 = vmatpush.bf16.msra.mxu0 0
    %1211 = vmatpush.bf16.msra.mxu0 %v1104
    %1212 = vmatpush.bf16.msra.mxu0 %v1102
    %1213 = vmatpush.bf16.msra.mxu0 %v1100
    %1214 = vmatpush.bf16.msra.mxu0 %v1098
    %1215 = vmatmul.bf16.gmra.mxu0 %v1192
    %v1216 = vpop.f32.mrf.mxu0
    %v1217 = vadd.f32 0.0, %v1216
    %v1218 = vpop.f32.mrf.mxu0
    %1219 = vdwg.mxu0
    %v1220 = vadd.f32 %v1067, %v1204
    %v1221 = vadd.f32 %v1068, %v1217
    %v1222 = vxor.u32 %v1220, 2147483648
    %v1223 = vxor.u32 %v1221, 2147483648
    %v1224 = vmul.f32 %v1222, 1.442695
    %v1225 = vpow.pop %v1224
    %v1226 = vmul.f32 %v1223, 1.442695
    %v1227 = vpow.pop %v1226
    %v1228 = vadd.f32 %v1225, 1.0
    %v1229 = vadd.f32 %v1227, 1.0
    %v1230 = vrcp.pop %v1228
    %v1231 = vmul.f32 %v1228, %v1230
    %v1232 = vsub.f32 1.0, %v1231
    %v1233 = vmul.f32 %v1230, %v1232
    %v1234 = vadd.f32 %v1230, %v1233
    %vm1235 = vweird.f32 %v1228
    %vm1236 = vweird.f32 %v1230
    %vm1237 = vmor %vm1235, %vm1236
    %v1238 = vsel %vm1237, %v1230, %v1234
    %v1239 = vand.u32 2147483647, %v1228
    %vm1240 = vcmp.eq.f32.partialorder %v1239, 8.507059e+37
    %v1241 = vand.u32 %v1228, 2147483648
    %v1242 = vor.u32 1.1754944e-38, %v1241
    %v1243 = vsel %vm1240, %v1242, %v1238
    %v1244 = vmul.f32 1.0, %v1243
    %v1245 = vrcp.pop %v1229
    %v1246 = vmul.f32 %v1229, %v1245
    %v1247 = vsub.f32 1.0, %v1246
    %v1248 = vmul.f32 %v1245, %v1247
    %v1249 = vadd.f32 %v1245, %v1248
    %vm1250 = vweird.f32 %v1229
    %vm1251 = vweird.f32 %v1245
    %vm1252 = vmor %vm1250, %vm1251
    %v1253 = vsel %vm1252, %v1245, %v1249
    %v1254 = vand.u32 2147483647, %v1229
    %vm1255 = vcmp.eq.f32.partialorder %v1254, 8.507059e+37
    %v1256 = vand.u32 %v1229, 2147483648
    %v1257 = vor.u32 1.1754944e-38, %v1256
    %v1258 = vsel %vm1255, %v1257, %v1253
    %v1259 = vmul.f32 1.0, %v1258
    %v1260 = vtanh.pop %v1221
    %v1261 = vmul.f32 %v1244, %v1182
    %1263 = vrot.lane.b32.xlu0 %v1260, 64
    %v1264 = vpop.permute.xlu0 %1263
    %v1266 = vmul.f32 %v1244, %v1264
    %1268 = vrot.lane.b32.xlu0 %v1266, 64
    %v1269 = vpop.permute.xlu0 %1268
    %v1271 = vadd.f32 %v1261, %v1269
    %v1272 = vtanh.pop %v1271
    %1274 = vrot.lane.b32.xlu0 %v1272, 64
    %v1275 = vpop.permute.xlu0 %1274
    %v1277 = vmul.f32 %v1259, %v1275
    %1278 = vst.msk [vmem:[#allocation3 + $0x8] sm:$0xff] %vm231, %v1277
    %v1279 = vpack.c.bf16 %v1277, %v1277
    %v1281 = vsel %vm231, %v1279, 0
    %1283 = vmatpush.bf16.msra.mxu0 0
    %1284 = vmatpush.bf16.msra.mxu0 0
    %1285 = vmatpush.bf16.msra.mxu0 0
    %1286 = vmatpush.bf16.msra.mxu0 0
    %1287 = vmatpush.bf16.msra.mxu0 %v1103
    %1288 = vmatpush.bf16.msra.mxu0 %v1101
    %1289 = vmatpush.bf16.msra.mxu0 %v1099
    %1290 = vmatpush.bf16.msra.mxu0 %v1097
    %1291 = vmatmul.bf16.gmra.mxu0 %v1281
    %v1292 = vpop.f32.mrf.mxu0
    %v1293 = vadd.f32 0.0, %v1292
    %v1294 = vpop.f32.mrf.mxu0
    %1295 = vdwg.mxu0
    %1296 = vmatpush.bf16.msra.mxu0 0
    %1297 = vmatpush.bf16.msra.mxu0 0
    %1298 = vmatpush.bf16.msra.mxu0 0
    %1299 = vmatpush.bf16.msra.mxu0 0
    %1300 = vmatpush.bf16.msra.mxu0 %v1104
    %1301 = vmatpush.bf16.msra.mxu0 %v1102
    %1302 = vmatpush.bf16.msra.mxu0 %v1100
    %1303 = vmatpush.bf16.msra.mxu0 %v1098
    %1304 = vmatmul.bf16.gmra.mxu0 %v1281
    %v1305 = vpop.f32.mrf.mxu0
    %v1306 = vadd.f32 0.0, %v1305
    %v1307 = vpop.f32.mrf.mxu0
    %1308 = vdwg.mxu0
    %v1309 = vadd.f32 %v1069, %v1293
    %v1310 = vadd.f32 %v1070, %v1306
    %v1311 = vxor.u32 %v1309, 2147483648
    %v1312 = vxor.u32 %v1310, 2147483648
    %v1313 = vmul.f32 %v1311, 1.442695
    %v1314 = vpow.pop %v1313
    %v1315 = vmul.f32 %v1312, 1.442695
    %v1316 = vpow.pop %v1315
    %v1317 = vadd.f32 %v1314, 1.0
    %v1318 = vadd.f32 %v1316, 1.0
    %v1319 = vrcp.pop %v1317
    %v1320 = vmul.f32 %v1317, %v1319
    %v1321 = vsub.f32 1.0, %v1320
    %v1322 = vmul.f32 %v1319, %v1321
    %v1323 = vadd.f32 %v1319, %v1322
    %vm1324 = vweird.f32 %v1317
    %vm1325 = vweird.f32 %v1319
    %vm1326 = vmor %vm1324, %vm1325
    %v1327 = vsel %vm1326, %v1319, %v1323
    %v1328 = vand.u32 2147483647, %v1317
    %vm1329 = vcmp.eq.f32.partialorder %v1328, 8.507059e+37
    %v1330 = vand.u32 %v1317, 2147483648
    %v1331 = vor.u32 1.1754944e-38, %v1330
    %v1332 = vsel %vm1329, %v1331, %v1327
    %v1333 = vmul.f32 1.0, %v1332
    %v1334 = vrcp.pop %v1318
    %v1335 = vmul.f32 %v1318, %v1334
    %v1336 = vsub.f32 1.0, %v1335
    %v1337 = vmul.f32 %v1334, %v1336
    %v1338 = vadd.f32 %v1334, %v1337
    %vm1339 = vweird.f32 %v1318
    %vm1340 = vweird.f32 %v1334
    %vm1341 = vmor %vm1339, %vm1340
    %v1342 = vsel %vm1341, %v1334, %v1338
    %v1343 = vand.u32 2147483647, %v1318
    %vm1344 = vcmp.eq.f32.partialorder %v1343, 8.507059e+37
    %v1345 = vand.u32 %v1318, 2147483648
    %v1346 = vor.u32 1.1754944e-38, %v1345
    %v1347 = vsel %vm1344, %v1346, %v1342
    %v1348 = vmul.f32 1.0, %v1347
    %v1349 = vtanh.pop %v1310
    %v1350 = vmul.f32 %v1333, %v1271
    %1352 = vrot.lane.b32.xlu0 %v1349, 64
    %v1353 = vpop.permute.xlu0 %1352
    %v1355 = vmul.f32 %v1333, %v1353
    %1357 = vrot.lane.b32.xlu0 %v1355, 64
    %v1358 = vpop.permute.xlu0 %1357
    %v1360 = vadd.f32 %v1350, %v1358
    %v1361 = vtanh.pop %v1360
    %1363 = vrot.lane.b32.xlu0 %v1361, 64
    %v1364 = vpop.permute.xlu0 %1363
    %v1366 = vmul.f32 %v1348, %v1364
    %1367 = vst.msk [vmem:[#allocation3 + $0x10] sm:$0xff] %vm231, %v1366
    %v1368 = vpack.c.bf16 %v1366, %v1366
    %v1370 = vsel %vm231, %v1368, 0
    %1372 = vmatpush.bf16.msra.mxu0 0
    %1373 = vmatpush.bf16.msra.mxu0 0
    %1374 = vmatpush.bf16.msra.mxu0 0
    %1375 = vmatpush.bf16.msra.mxu0 0
    %1376 = vmatpush.bf16.msra.mxu0 %v1103
    %1377 = vmatpush.bf16.msra.mxu0 %v1101
    %1378 = vmatpush.bf16.msra.mxu0 %v1099
    %1379 = vmatpush.bf16.msra.mxu0 %v1097
    %1380 = vmatmul.bf16.gmra.mxu0 %v1370
    %v1381 = vpop.f32.mrf.mxu0
    %v1382 = vadd.f32 0.0, %v1381
    %v1383 = vpop.f32.mrf.mxu0
    %1384 = vdwg.mxu0
    %1385 = vmatpush.bf16.msra.mxu0 0
    %1386 = vmatpush.bf16.msra.mxu0 0
    %1387 = vmatpush.bf16.msra.mxu0 0
    %1388 = vmatpush.bf16.msra.mxu0 0
    %1389 = vmatpush.bf16.msra.mxu0 %v1104
    %1390 = vmatpush.bf16.msra.mxu0 %v1102
    %1391 = vmatpush.bf16.msra.mxu0 %v1100
    %1392 = vmatpush.bf16.msra.mxu0 %v1098
    %1393 = vmatmul.bf16.gmra.mxu0 %v1370
    %v1394 = vpop.f32.mrf.mxu0
    %v1395 = vadd.f32 0.0, %v1394
    %v1396 = vpop.f32.mrf.mxu0
    %1397 = vdwg.mxu0
    %v1398 = vadd.f32 %v1071, %v1382
    %v1399 = vadd.f32 %v1072, %v1395
    %v1400 = vxor.u32 %v1398, 2147483648
    %v1401 = vxor.u32 %v1399, 2147483648
    %v1402 = vmul.f32 %v1400, 1.442695
    %v1403 = vpow.pop %v1402
    %v1404 = vmul.f32 %v1401, 1.442695
    %v1405 = vpow.pop %v1404
    %v1406 = vadd.f32 %v1403, 1.0
    %v1407 = vadd.f32 %v1405, 1.0
    %v1408 = vrcp.pop %v1406
    %v1409 = vmul.f32 %v1406, %v1408
    %v1410 = vsub.f32 1.0, %v1409
    %v1411 = vmul.f32 %v1408, %v1410
    %v1412 = vadd.f32 %v1408, %v1411
    %vm1413 = vweird.f32 %v1406
    %vm1414 = vweird.f32 %v1408
    %vm1415 = vmor %vm1413, %vm1414
    %v1416 = vsel %vm1415, %v1408, %v1412
    %v1417 = vand.u32 2147483647, %v1406
    %vm1418 = vcmp.eq.f32.partialorder %v1417, 8.507059e+37
    %v1419 = vand.u32 %v1406, 2147483648
    %v1420 = vor.u32 1.1754944e-38, %v1419
    %v1421 = vsel %vm1418, %v1420, %v1416
    %v1422 = vmul.f32 1.0, %v1421
    %v1423 = vrcp.pop %v1407
    %v1424 = vmul.f32 %v1407, %v1423
    %v1425 = vsub.f32 1.0, %v1424
    %v1426 = vmul.f32 %v1423, %v1425
    %v1427 = vadd.f32 %v1423, %v1426
    %vm1428 = vweird.f32 %v1407
    %vm1429 = vweird.f32 %v1423
    %vm1430 = vmor %vm1428, %vm1429
    %v1431 = vsel %vm1430, %v1423, %v1427
    %v1432 = vand.u32 2147483647, %v1407
    %vm1433 = vcmp.eq.f32.partialorder %v1432, 8.507059e+37
    %v1434 = vand.u32 %v1407, 2147483648
    %v1435 = vor.u32 1.1754944e-38, %v1434
    %v1436 = vsel %vm1433, %v1435, %v1431
    %v1437 = vmul.f32 1.0, %v1436
    %v1438 = vtanh.pop %v1399
    %v1439 = vmul.f32 %v1422, %v1360
    %1441 = vrot.lane.b32.xlu0 %v1438, 64
    %v1442 = vpop.permute.xlu0 %1441
    %v1444 = vmul.f32 %v1422, %v1442
    %1446 = vrot.lane.b32.xlu0 %v1444, 64
    %v1447 = vpop.permute.xlu0 %1446
    %v1449 = vadd.f32 %v1439, %v1447
    %v1450 = vtanh.pop %v1449
    %1452 = vrot.lane.b32.xlu0 %v1450, 64
    %v1453 = vpop.permute.xlu0 %1452
    %v1455 = vmul.f32 %v1437, %v1453
    %1456 = vst.msk [vmem:[#allocation3 + $0x18] sm:$0xff] %vm231, %v1455
    %v1457 = vpack.c.bf16 %v1455, %v1455
    %v1459 = vsel %vm231, %v1457, 0
    %1461 = vmatpush.bf16.msra.mxu0 0
    %1462 = vmatpush.bf16.msra.mxu0 0
    %1463 = vmatpush.bf16.msra.mxu0 0
    %1464 = vmatpush.bf16.msra.mxu0 0
    %1465 = vmatpush.bf16.msra.mxu0 %v1103
    %1466 = vmatpush.bf16.msra.mxu0 %v1101
    %1467 = vmatpush.bf16.msra.mxu0 %v1099
    %1468 = vmatpush.bf16.msra.mxu0 %v1097
    %1469 = vmatmul.bf16.gmra.mxu0 %v1459
    %v1470 = vpop.f32.mrf.mxu0
    %v1471 = vadd.f32 0.0, %v1470
    %v1472 = vpop.f32.mrf.mxu0
    %1473 = vdwg.mxu0
    %1474 = vmatpush.bf16.msra.mxu0 0
    %1475 = vmatpush.bf16.msra.mxu0 0
    %1476 = vmatpush.bf16.msra.mxu0 0
    %1477 = vmatpush.bf16.msra.mxu0 0
    %1478 = vmatpush.bf16.msra.mxu0 %v1104
    %1479 = vmatpush.bf16.msra.mxu0 %v1102
    %1480 = vmatpush.bf16.msra.mxu0 %v1100
    %1481 = vmatpush.bf16.msra.mxu0 %v1098
    %1482 = vmatmul.bf16.gmra.mxu0 %v1459
    %v1483 = vpop.f32.mrf.mxu0
    %v1484 = vadd.f32 0.0, %v1483
    %v1485 = vpop.f32.mrf.mxu0
    %1486 = vdwg.mxu0
    %v1487 = vadd.f32 %v1073, %v1471
    %v1488 = vadd.f32 %v1074, %v1484
    %v1489 = vxor.u32 %v1487, 2147483648
    %v1490 = vxor.u32 %v1488, 2147483648
    %v1491 = vmul.f32 %v1489, 1.442695
    %v1492 = vpow.pop %v1491
    %v1493 = vmul.f32 %v1490, 1.442695
    %v1494 = vpow.pop %v1493
    %v1495 = vadd.f32 %v1492, 1.0
    %v1496 = vadd.f32 %v1494, 1.0
    %v1497 = vrcp.pop %v1495
    %v1498 = vmul.f32 %v1495, %v1497
    %v1499 = vsub.f32 1.0, %v1498
    %v1500 = vmul.f32 %v1497, %v1499
    %v1501 = vadd.f32 %v1497, %v1500
    %vm1502 = vweird.f32 %v1495
    %vm1503 = vweird.f32 %v1497
    %vm1504 = vmor %vm1502, %vm1503
    %v1505 = vsel %vm1504, %v1497, %v1501
    %v1506 = vand.u32 2147483647, %v1495
    %vm1507 = vcmp.eq.f32.partialorder %v1506, 8.507059e+37
    %v1508 = vand.u32 %v1495, 2147483648
    %v1509 = vor.u32 1.1754944e-38, %v1508
    %v1510 = vsel %vm1507, %v1509, %v1505
    %v1511 = vmul.f32 1.0, %v1510
    %v1512 = vrcp.pop %v1496
    %v1513 = vmul.f32 %v1496, %v1512
    %v1514 = vsub.f32 1.0, %v1513
    %v1515 = vmul.f32 %v1512, %v1514
    %v1516 = vadd.f32 %v1512, %v1515
    %vm1517 = vweird.f32 %v1496
    %vm1518 = vweird.f32 %v1512
    %vm1519 = vmor %vm1517, %vm1518
    %v1520 = vsel %vm1519, %v1512, %v1516
    %v1521 = vand.u32 2147483647, %v1496
    %vm1522 = vcmp.eq.f32.partialorder %v1521, 8.507059e+37
    %v1523 = vand.u32 %v1496, 2147483648
    %v1524 = vor.u32 1.1754944e-38, %v1523
    %v1525 = vsel %vm1522, %v1524, %v1520
    %v1526 = vmul.f32 1.0, %v1525
    %v1527 = vtanh.pop %v1488
    %v1528 = vmul.f32 %v1511, %v1449
    %1530 = vrot.lane.b32.xlu0 %v1527, 64
    %v1531 = vpop.permute.xlu0 %1530
    %v1533 = vmul.f32 %v1511, %v1531
    %1535 = vrot.lane.b32.xlu0 %v1533, 64
    %v1536 = vpop.permute.xlu0 %1535
    %v1538 = vadd.f32 %v1528, %v1536
    %v1539 = vtanh.pop %v1538
    %1541 = vrot.lane.b32.xlu0 %v1539, 64
    %v1542 = vpop.permute.xlu0 %1541
    %v1544 = vmul.f32 %v1526, %v1542
    %1545 = vst.msk [vmem:[#allocation3 + $0x20] sm:$0xff] %vm231, %v1544
    %v1546 = vpack.c.bf16 %v1544, %v1544
    %v1548 = vsel %vm231, %v1546, 0
    %1550 = vmatpush.bf16.msra.mxu0 0
    %1551 = vmatpush.bf16.msra.mxu0 0
    %1552 = vmatpush.bf16.msra.mxu0 0
    %1553 = vmatpush.bf16.msra.mxu0 0
    %1554 = vmatpush.bf16.msra.mxu0 %v1103
    %1555 = vmatpush.bf16.msra.mxu0 %v1101
    %1556 = vmatpush.bf16.msra.mxu0 %v1099
    %1557 = vmatpush.bf16.msra.mxu0 %v1097
    %1558 = vmatmul.bf16.gmra.mxu0 %v1548
    %v1559 = vpop.f32.mrf.mxu0
    %v1560 = vadd.f32 0.0, %v1559
    %v1561 = vpop.f32.mrf.mxu0
    %1562 = vdwg.mxu0
    %1563 = vmatpush.bf16.msra.mxu0 0
    %1564 = vmatpush.bf16.msra.mxu0 0
    %1565 = vmatpush.bf16.msra.mxu0 0
    %1566 = vmatpush.bf16.msra.mxu0 0
    %1567 = vmatpush.bf16.msra.mxu0 %v1104
    %1568 = vmatpush.bf16.msra.mxu0 %v1102
    %1569 = vmatpush.bf16.msra.mxu0 %v1100
    %1570 = vmatpush.bf16.msra.mxu0 %v1098
    %1571 = vmatmul.bf16.gmra.mxu0 %v1548
    %v1572 = vpop.f32.mrf.mxu0
    %v1573 = vadd.f32 0.0, %v1572
    %v1574 = vpop.f32.mrf.mxu0
    %1575 = vdwg.mxu0
    %v1576 = vadd.f32 %v1075, %v1560
    %v1577 = vadd.f32 %v1076, %v1573
    %v1578 = vxor.u32 %v1576, 2147483648
    %v1579 = vxor.u32 %v1577, 2147483648
    %v1580 = vmul.f32 %v1578, 1.442695
    %v1581 = vpow.pop %v1580
    %v1582 = vmul.f32 %v1579, 1.442695
    %v1583 = vpow.pop %v1582
    %v1584 = vadd.f32 %v1581, 1.0
    %v1585 = vadd.f32 %v1583, 1.0
    %v1586 = vrcp.pop %v1584
    %v1587 = vmul.f32 %v1584, %v1586
    %v1588 = vsub.f32 1.0, %v1587
    %v1589 = vmul.f32 %v1586, %v1588
    %v1590 = vadd.f32 %v1586, %v1589
    %vm1591 = vweird.f32 %v1584
    %vm1592 = vweird.f32 %v1586
    %vm1593 = vmor %vm1591, %vm1592
    %v1594 = vsel %vm1593, %v1586, %v1590
    %v1595 = vand.u32 2147483647, %v1584
    %vm1596 = vcmp.eq.f32.partialorder %v1595, 8.507059e+37
    %v1597 = vand.u32 %v1584, 2147483648
    %v1598 = vor.u32 1.1754944e-38, %v1597
    %v1599 = vsel %vm1596, %v1598, %v1594
    %v1600 = vmul.f32 1.0, %v1599
    %v1601 = vrcp.pop %v1585
    %v1602 = vmul.f32 %v1585, %v1601
    %v1603 = vsub.f32 1.0, %v1602
    %v1604 = vmul.f32 %v1601, %v1603
    %v1605 = vadd.f32 %v1601, %v1604
    %vm1606 = vweird.f32 %v1585
    %vm1607 = vweird.f32 %v1601
    %vm1608 = vmor %vm1606, %vm1607
    %v1609 = vsel %vm1608, %v1601, %v1605
    %v1610 = vand.u32 2147483647, %v1585
    %vm1611 = vcmp.eq.f32.partialorder %v1610, 8.507059e+37
    %v1612 = vand.u32 %v1585, 2147483648
    %v1613 = vor.u32 1.1754944e-38, %v1612
    %v1614 = vsel %vm1611, %v1613, %v1609
    %v1615 = vmul.f32 1.0, %v1614
    %v1616 = vtanh.pop %v1577
    %v1617 = vmul.f32 %v1600, %v1538
    %1619 = vrot.lane.b32.xlu0 %v1616, 64
    %v1620 = vpop.permute.xlu0 %1619
    %v1622 = vmul.f32 %v1600, %v1620
    %1624 = vrot.lane.b32.xlu0 %v1622, 64
    %v1625 = vpop.permute.xlu0 %1624
    %v1627 = vadd.f32 %v1617, %v1625
    %v1628 = vtanh.pop %v1627
    %1630 = vrot.lane.b32.xlu0 %v1628, 64
    %v1631 = vpop.permute.xlu0 %1630
    %v1633 = vmul.f32 %v1615, %v1631
    %1634 = vst.msk [vmem:[#allocation3 + $0x28] sm:$0xff] %vm231, %v1633
    %v1635 = vpack.c.bf16 %v1633, %v1633
    %v1637 = vsel %vm231, %v1635, 0
    %1639 = vmatpush.bf16.msra.mxu0 0
    %1640 = vmatpush.bf16.msra.mxu0 0
    %1641 = vmatpush.bf16.msra.mxu0 0
    %1642 = vmatpush.bf16.msra.mxu0 0
    %1643 = vmatpush.bf16.msra.mxu0 %v1103
    %1644 = vmatpush.bf16.msra.mxu0 %v1101
    %1645 = vmatpush.bf16.msra.mxu0 %v1099
    %1646 = vmatpush.bf16.msra.mxu0 %v1097
    %1647 = vmatmul.bf16.gmra.mxu0 %v1637
    %v1648 = vpop.f32.mrf.mxu0
    %v1649 = vadd.f32 0.0, %v1648
    %v1650 = vpop.f32.mrf.mxu0
    %1651 = vdwg.mxu0
    %1652 = vmatpush.bf16.msra.mxu0 0
    %1653 = vmatpush.bf16.msra.mxu0 0
    %1654 = vmatpush.bf16.msra.mxu0 0
    %1655 = vmatpush.bf16.msra.mxu0 0
    %1656 = vmatpush.bf16.msra.mxu0 %v1104
    %1657 = vmatpush.bf16.msra.mxu0 %v1102
    %1658 = vmatpush.bf16.msra.mxu0 %v1100
    %1659 = vmatpush.bf16.msra.mxu0 %v1098
    %1660 = vmatmul.bf16.gmra.mxu0 %v1637
    %v1661 = vpop.f32.mrf.mxu0
    %v1662 = vadd.f32 0.0, %v1661
    %v1663 = vpop.f32.mrf.mxu0
    %1664 = vdwg.mxu0
    %v1665 = vadd.f32 %v1077, %v1649
    %v1666 = vadd.f32 %v1078, %v1662
    %v1667 = vxor.u32 %v1665, 2147483648
    %v1668 = vxor.u32 %v1666, 2147483648
    %v1669 = vmul.f32 %v1667, 1.442695
    %v1670 = vpow.pop %v1669
    %v1671 = vmul.f32 %v1668, 1.442695
    %v1672 = vpow.pop %v1671
    %v1673 = vadd.f32 %v1670, 1.0
    %v1674 = vadd.f32 %v1672, 1.0
    %v1675 = vrcp.pop %v1673
    %v1676 = vmul.f32 %v1673, %v1675
    %v1677 = vsub.f32 1.0, %v1676
    %v1678 = vmul.f32 %v1675, %v1677
    %v1679 = vadd.f32 %v1675, %v1678
    %vm1680 = vweird.f32 %v1673
    %vm1681 = vweird.f32 %v1675
    %vm1682 = vmor %vm1680, %vm1681
    %v1683 = vsel %vm1682, %v1675, %v1679
    %v1684 = vand.u32 2147483647, %v1673
    %vm1685 = vcmp.eq.f32.partialorder %v1684, 8.507059e+37
    %v1686 = vand.u32 %v1673, 2147483648
    %v1687 = vor.u32 1.1754944e-38, %v1686
    %v1688 = vsel %vm1685, %v1687, %v1683
    %v1689 = vmul.f32 1.0, %v1688
    %v1690 = vrcp.pop %v1674
    %v1691 = vmul.f32 %v1674, %v1690
    %v1692 = vsub.f32 1.0, %v1691
    %v1693 = vmul.f32 %v1690, %v1692
    %v1694 = vadd.f32 %v1690, %v1693
    %vm1695 = vweird.f32 %v1674
    %vm1696 = vweird.f32 %v1690
    %vm1697 = vmor %vm1695, %vm1696
    %v1698 = vsel %vm1697, %v1690, %v1694
    %v1699 = vand.u32 2147483647, %v1674
    %vm1700 = vcmp.eq.f32.partialorder %v1699, 8.507059e+37
    %v1701 = vand.u32 %v1674, 2147483648
    %v1702 = vor.u32 1.1754944e-38, %v1701
    %v1703 = vsel %vm1700, %v1702, %v1698
    %v1704 = vmul.f32 1.0, %v1703
    %v1705 = vtanh.pop %v1666
    %v1706 = vmul.f32 %v1689, %v1627
    %1708 = vrot.lane.b32.xlu0 %v1705, 64
    %v1709 = vpop.permute.xlu0 %1708
    %v1711 = vmul.f32 %v1689, %v1709
    %1713 = vrot.lane.b32.xlu0 %v1711, 64
    %v1714 = vpop.permute.xlu0 %1713
    %v1716 = vadd.f32 %v1706, %v1714
    %v1717 = vtanh.pop %v1716
    %1719 = vrot.lane.b32.xlu0 %v1717, 64
    %v1720 = vpop.permute.xlu0 %1719
    %v1722 = vmul.f32 %v1704, %v1720
    %1723 = vst.msk [vmem:[#allocation3 + $0x30] sm:$0xff] %vm231, %v1722
    %v1724 = vpack.c.bf16 %v1722, %v1722
    %v1726 = vsel %vm231, %v1724, 0
    %1728 = vmatpush.bf16.msra.mxu0 0
    %1729 = vmatpush.bf16.msra.mxu0 0
    %1730 = vmatpush.bf16.msra.mxu0 0
    %1731 = vmatpush.bf16.msra.mxu0 0
    %1732 = vmatpush.bf16.msra.mxu0 %v1103
    %1733 = vmatpush.bf16.msra.mxu0 %v1101
    %1734 = vmatpush.bf16.msra.mxu0 %v1099
    %1735 = vmatpush.bf16.msra.mxu0 %v1097
    %1736 = vmatmul.bf16.gmra.mxu0 %v1726
    %v1737 = vpop.f32.mrf.mxu0
    %v1738 = vadd.f32 0.0, %v1737
    %v1739 = vpop.f32.mrf.mxu0
    %1740 = vdwg.mxu0
    %1741 = vmatpush.bf16.msra.mxu0 0
    %1742 = vmatpush.bf16.msra.mxu0 0
    %1743 = vmatpush.bf16.msra.mxu0 0
    %1744 = vmatpush.bf16.msra.mxu0 0
    %1745 = vmatpush.bf16.msra.mxu0 %v1104
    %1746 = vmatpush.bf16.msra.mxu0 %v1102
    %1747 = vmatpush.bf16.msra.mxu0 %v1100
    %1748 = vmatpush.bf16.msra.mxu0 %v1098
    %1749 = vmatmul.bf16.gmra.mxu0 %v1726
    %v1750 = vpop.f32.mrf.mxu0
    %v1751 = vadd.f32 0.0, %v1750
    %v1752 = vpop.f32.mrf.mxu0
    %1753 = vdwg.mxu0
    %v1754 = vadd.f32 %v1079, %v1738
    %v1755 = vadd.f32 %v1080, %v1751
    %v1756 = vxor.u32 %v1754, 2147483648
    %v1757 = vxor.u32 %v1755, 2147483648
    %v1758 = vmul.f32 %v1756, 1.442695
    %v1759 = vpow.pop %v1758
    %v1760 = vmul.f32 %v1757, 1.442695
    %v1761 = vpow.pop %v1760
    %v1762 = vadd.f32 %v1759, 1.0
    %v1763 = vadd.f32 %v1761, 1.0
    %v1764 = vrcp.pop %v1762
    %v1765 = vmul.f32 %v1762, %v1764
    %v1766 = vsub.f32 1.0, %v1765
    %v1767 = vmul.f32 %v1764, %v1766
    %v1768 = vadd.f32 %v1764, %v1767
    %vm1769 = vweird.f32 %v1762
    %vm1770 = vweird.f32 %v1764
    %vm1771 = vmor %vm1769, %vm1770
    %v1772 = vsel %vm1771, %v1764, %v1768
    %v1773 = vand.u32 2147483647, %v1762
    %vm1774 = vcmp.eq.f32.partialorder %v1773, 8.507059e+37
    %v1775 = vand.u32 %v1762, 2147483648
    %v1776 = vor.u32 1.1754944e-38, %v1775
    %v1777 = vsel %vm1774, %v1776, %v1772
    %v1778 = vmul.f32 1.0, %v1777
    %v1779 = vrcp.pop %v1763
    %v1780 = vmul.f32 %v1763, %v1779
    %v1781 = vsub.f32 1.0, %v1780
    %v1782 = vmul.f32 %v1779, %v1781
    %v1783 = vadd.f32 %v1779, %v1782
    %vm1784 = vweird.f32 %v1763
    %vm1785 = vweird.f32 %v1779
    %vm1786 = vmor %vm1784, %vm1785
    %v1787 = vsel %vm1786, %v1779, %v1783
    %v1788 = vand.u32 2147483647, %v1763
    %vm1789 = vcmp.eq.f32.partialorder %v1788, 8.507059e+37
    %v1790 = vand.u32 %v1763, 2147483648
    %v1791 = vor.u32 1.1754944e-38, %v1790
    %v1792 = vsel %vm1789, %v1791, %v1787
    %v1793 = vmul.f32 1.0, %v1792
    %v1794 = vtanh.pop %v1755
    %v1795 = vmul.f32 %v1778, %v1716
    %1797 = vrot.lane.b32.xlu0 %v1794, 64
    %v1798 = vpop.permute.xlu0 %1797
    %v1800 = vmul.f32 %v1778, %v1798
    %1802 = vrot.lane.b32.xlu0 %v1800, 64
    %v1803 = vpop.permute.xlu0 %1802
    %v1805 = vadd.f32 %v1795, %v1803
    %v1806 = vtanh.pop %v1805
    %1808 = vrot.lane.b32.xlu0 %v1806, 64
    %v1809 = vpop.permute.xlu0 %1808
    %v1811 = vmul.f32 %v1793, %v1809
    %1812 = vst.msk [vmem:[#allocation3 + $0x38] sm:$0xff] %vm231, %v1811
    %v1813 = vld [vmem:[#allocation3] sm:$0xff]
    %v1814 = vld [vmem:[#allocation3 + $0x8] sm:$0xff]
    %v1815 = vld [vmem:[#allocation3 + $0x10] sm:$0xff]
    %v1816 = vld [vmem:[#allocation3 + $0x18] sm:$0xff]
    %v1817 = vld [vmem:[#allocation3 + $0x20] sm:$0xff]
    %v1818 = vld [vmem:[#allocation3 + $0x28] sm:$0xff]
    %v1819 = vld [vmem:[#allocation3 + $0x30] sm:$0xff]
    %v1820 = vld [vmem:[#allocation3 + $0x38] sm:$0xff]
    %v1821 = vsel %vm952, %v1813, %v1820
    %v1822 = vsel %vm952, %v1814, %v1819
    %v1823 = vsel %vm952, %v1815, %v1818
    %v1824 = vsel %vm952, %v1816, %v1817
    %v1825 = vsel %vm952, %v1817, %v1816
    %v1826 = vsel %vm952, %v1818, %v1815
    %v1827 = vsel %vm952, %v1819, %v1814
    %v1828 = vsel %vm952, %v1820, %v1813
    %v1829 = vtanh.pop %v1821
    %v1830 = vtanh.pop %v1822
    %v1831 = vtanh.pop %v1823
    %v1832 = vtanh.pop %v1824
    %v1833 = vtanh.pop %v1825
    %v1834 = vtanh.pop %v1826
    %v1835 = vtanh.pop %v1827
    %v1836 = vtanh.pop %v1828
    %v1837 = vld [vmem:[%s7] sm:$0xff]
    %v1838 = vld [vmem:[%s7 + $0x8] sm:$0xff]
    %v1839 = vld [vmem:[%s7 + $0x10] sm:$0xff]
    %v1840 = vld [vmem:[%s7 + $0x18] sm:$0xff]
    %v1841 = vld [vmem:[%s7 + $0x20] sm:$0xff]
    %v1842 = vld [vmem:[%s7 + $0x28] sm:$0xff]
    %v1843 = vld [vmem:[%s7 + $0x30] sm:$0xff]
    %v1844 = vld [vmem:[%s7 + $0x38] sm:$0xff]
    %s1845 = sld [smem:[#allocation4]]
    %v1846 = vstv %s1845
    %v1848 = vsel %vm231, %v1829, 0
    %v1851 = vsel %vm231, %v1830, 0
    %v1854 = vsel %vm231, %v1831, 0
    %v1857 = vsel %vm231, %v1832, 0
    %v1860 = vsel %vm231, %v1833, 0
    %v1863 = vsel %vm231, %v1834, 0
    %v1866 = vsel %vm231, %v1835, 0
    %v1869 = vsel %vm231, %v1836, 0
    %1871 = vmatpush.msra.mxu0 0.0
    %1872 = vmatpush.msra.mxu0 0.0
    %1873 = vmatpush.msra.mxu0 0.0
    %1874 = vmatpush.msra.mxu0 0.0
    %1875 = vmatpush.msra.mxu0 0.0
    %1876 = vmatpush.msra.mxu0 0.0
    %1877 = vmatpush.msra.mxu0 0.0
    %1878 = vmatpush.msra.mxu0 0.0
    %1879 = vmatpush.msra.mxu0 %v1844
    %1880 = vmatpush.msra.mxu0 %v1843
    %1881 = vmatpush.msra.mxu0 %v1842
    %1882 = vmatpush.msra.mxu0 %v1841
    %1883 = vmatpush.msra.mxu0 %v1840
    %1884 = vmatpush.msra.mxu0 %v1839
    %1885 = vmatpush.msra.mxu0 %v1838
    %1886 = vmatpush.msra.mxu0 %v1837
    %1887 = vmatmul.f32.gmra.mxu0 %v1848
    %v1888 = vpop.f32.mrf.mxu0
    %v1889 = vadd.f32 %v1846, %v1888
    %1890 = vmatmul.f32.gmra.mxu0 %v1851
    %v1891 = vpop.f32.mrf.mxu0
    %v1892 = vadd.f32 %v1846, %v1891
    %1893 = vmatmul.f32.gmra.mxu0 %v1854
    %v1894 = vpop.f32.mrf.mxu0
    %v1895 = vadd.f32 %v1846, %v1894
    %1896 = vmatmul.f32.gmra.mxu0 %v1857
    %v1897 = vpop.f32.mrf.mxu0
    %v1898 = vadd.f32 %v1846, %v1897
    %1899 = vmatmul.f32.gmra.mxu0 %v1860
    %v1900 = vpop.f32.mrf.mxu0
    %v1901 = vadd.f32 %v1846, %v1900
    %1902 = vmatmul.f32.gmra.mxu0 %v1863
    %v1903 = vpop.f32.mrf.mxu0
    %v1904 = vadd.f32 %v1846, %v1903
    %1905 = vmatmul.f32.gmra.mxu0 %v1866
    %v1906 = vpop.f32.mrf.mxu0
    %v1907 = vadd.f32 %v1846, %v1906
    %1908 = vmatmul.f32.gmra.mxu0 %v1869
    %v1909 = vpop.f32.mrf.mxu0
    %v1910 = vadd.f32 %v1846, %v1909
    %1911 = vdwg.mxu0
    %vm1912 = vcmask 7168
    %v1913 = vsel %vm1912, %v1889, -inf
    %v1914 = vsel %vm1912, %v1892, -inf
    %v1915 = vsel %vm1912, %v1895, -inf
    %v1916 = vsel %vm1912, %v1898, -inf
    %v1917 = vsel %vm1912, %v1901, -inf
    %v1918 = vmax.f32 %v1913, %v1917
    %v1919 = vsel %vm1912, %v1904, -inf
    %v1920 = vmax.f32 %v1914, %v1919
    %v1921 = vsel %vm1912, %v1907, -inf
    %v1922 = vmax.f32 %v1915, %v1921
    %v1923 = vsel %vm1912, %v1910, -inf
    %v1924 = vmax.f32 %v1916, %v1923
    %v1925 = vmax.f32 %v1918, %v1920
    %v1926 = vmax.f32 %v1922, %v1924
    %v1927 = vmax.f32 %v1925, %v1926
    %v1928 = vrot.slane %v1927, 4
    %v1929 = vmax.f32 %v1927, %v1928
    %v1930 = vrot.slane %v1929, 2
    %v1931 = vmax.f32 %v1929, %v1930
    %v1932 = vrot.slane %v1931, 1
    %v1933 = vmax.f32 %v1931, %v1932
    %v1934 = vsub.f32 %v1889, %v1933
    %v1935 = vsub.f32 %v1892, %v1933
    %v1936 = vsub.f32 %v1895, %v1933
    %v1937 = vsub.f32 %v1898, %v1933
    %v1938 = vsub.f32 %v1901, %v1933
    %v1939 = vsub.f32 %v1904, %v1933
    %v1940 = vsub.f32 %v1907, %v1933
    %v1941 = vsub.f32 %v1910, %v1933
    %v1942 = vmul.f32 %v1934, 1.442695
    %v1943 = vpow.pop %v1942
    %v1944 = vmul.f32 %v1935, 1.442695
    %v1945 = vpow.pop %v1944
    %v1946 = vmul.f32 %v1936, 1.442695
    %v1947 = vpow.pop %v1946
    %v1948 = vmul.f32 %v1937, 1.442695
    %v1949 = vpow.pop %v1948
    %v1950 = vmul.f32 %v1938, 1.442695
    %v1951 = vpow.pop %v1950
    %v1952 = vmul.f32 %v1939, 1.442695
    %v1953 = vpow.pop %v1952
    %v1954 = vmul.f32 %v1940, 1.442695
    %v1955 = vpow.pop %v1954
    %v1956 = vmul.f32 %v1941, 1.442695
    %v1957 = vpow.pop %v1956
    %v1958 = vlaneseq
    %v1959 = vshrl.u32 %v1958, 7
    %vm1960 = vcmp.lt.s32.totalorder %v57, 0
    %v1961 = vsub.s32 0, %v57
    %v1962 = vsel %vm1960, %v1961, %v57
    %v1963 = vshrl.u32 %v1962, 3
    %v1964 = vand.u32 %v1962, 7
    %v1965 = vsub.s32 0, %v1964
    %v1966 = vsel %vm1960, %v1965, %v1964
    %vm1967 = vcmp.ne.s32.totalorder %v1966, 0
    %vm1968 = vcmp.lt.s32.totalorder %v1966, 0
    %vm1969 = vmand %vm1968, %vm1967
    %v1970 = vadd.s32 %v1966, 8
    %v1971 = vsel %vm1969, %v1970, %v1966
    %vm1972 = vcmp.eq.s32.totalorder %v1971, %v1959
    %v1973 = vsel %vm1972, 1, 0
    %v1974 = vcvt.s32.f32 %v1973
    %1976 = vset.pattern.permute.xlu0 0
    %1977 = vperm.xlu0 %1976, %v1943
    %v1978 = vpop.permute.xlu0 %1977
    %1981 = vset.pattern.permute.xlu0 0
    %1982 = vperm.xlu0 %1981, %v1945
    %v1983 = vpop.permute.xlu0 %1982
    %1986 = vset.pattern.permute.xlu0 0
    %1987 = vperm.xlu0 %1986, %v1947
    %v1988 = vpop.permute.xlu0 %1987
    %1991 = vset.pattern.permute.xlu0 0
    %1992 = vperm.xlu0 %1991, %v1949
    %v1993 = vpop.permute.xlu0 %1992
    %1996 = vset.pattern.permute.xlu0 0
    %1997 = vperm.xlu0 %1996, %v1951
    %v1998 = vpop.permute.xlu0 %1997
    %2001 = vset.pattern.permute.xlu0 0
    %2002 = vperm.xlu0 %2001, %v1953
    %v2003 = vpop.permute.xlu0 %2002
    %2006 = vset.pattern.permute.xlu0 0
    %2007 = vperm.xlu0 %2006, %v1955
    %v2008 = vpop.permute.xlu0 %2007
    %2011 = vset.pattern.permute.xlu0 0
    %2012 = vperm.xlu0 %2011, %v1957
    %v2013 = vpop.permute.xlu0 %2012
    %v2015 = vmul.f32 %v1821, %v1978
    %v2016 = vmul.f32 %v1822, %v1983
    %v2017 = vmul.f32 %v1823, %v1988
    %v2018 = vmul.f32 %v1824, %v1993
    %v2019 = vmul.f32 %v1825, %v1998
    %v2020 = vmul.f32 %v1826, %v2003
    %v2021 = vmul.f32 %v1827, %v2008
    %v2022 = vmul.f32 %v1828, %v2013
    %v2024 = vsel %vm231, %v1974, 0
    %2026 = vmatpush.msra.mxu0 0.0
    %2027 = vmatpush.msra.mxu0 0.0
    %2028 = vmatpush.msra.mxu0 0.0
    %2029 = vmatpush.msra.mxu0 0.0
    %2030 = vmatpush.msra.mxu0 0.0
    %2031 = vmatpush.msra.mxu0 0.0
    %2032 = vmatpush.msra.mxu0 0.0
    %2033 = vmatpush.msra.mxu0 0.0
    %2034 = vmatpush.msra.mxu0 %v2022
    %2035 = vmatpush.msra.mxu0 %v2021
    %2036 = vmatpush.msra.mxu0 %v2020
    %2037 = vmatpush.msra.mxu0 %v2019
    %2038 = vmatpush.msra.mxu0 %v2018
    %2039 = vmatpush.msra.mxu0 %v2017
    %2040 = vmatpush.msra.mxu0 %v2016
    %2041 = vmatpush.msra.mxu0 %v2015
    %2042 = vmatmul.f32.gmra.mxu0 %v2024
    %v2043 = vpop.f32.mrf.mxu0
    %v2044 = vadd.f32 0.0, %v2043
    %2045 = vdwg.mxu0
    %2046 = vmatpush.msra.mxu0 0.0
    %2047 = vmatpush.msra.mxu0 0.0
    %2048 = vmatpush.msra.mxu0 0.0
    %2049 = vmatpush.msra.mxu0 0.0
    %2050 = vmatpush.msra.mxu0 0.0
    %2051 = vmatpush.msra.mxu0 0.0
    %2052 = vmatpush.msra.mxu0 0.0
    %2053 = vmatpush.msra.mxu0 0.0
    %2054 = vmatpush.msra.mxu0 %v1957
    %2055 = vmatpush.msra.mxu0 %v1955
    %2056 = vmatpush.msra.mxu0 %v1953
    %2057 = vmatpush.msra.mxu0 %v1951
    %2058 = vmatpush.msra.mxu0 %v1949
    %2059 = vmatpush.msra.mxu0 %v1947
    %2060 = vmatpush.msra.mxu0 %v1945
    %2061 = vmatpush.msra.mxu0 %v1943
    %2062 = vmatmul.f32.gmra.mxu0 %v2024
    %v2063 = vpop.f32.mrf.mxu0
    %v2064 = vadd.f32 0.0, %v2063
    %2065 = vdwg.mxu0
    %v2066 = vrcp.pop %v2064
    %2068 = vset.pattern.permute.xlu0 0
    %2069 = vperm.xlu0 %2068, %v2066
    %v2070 = vpop.permute.xlu0 %2069
    %v2072 = vmul.f32 %v2044, %v2070
    %v2073 = vtanh.pop %v2072
    %v2074 = vld [vmem:[%s9] sm:$0xff]
    %v2075 = vld [vmem:[%s9 + $0x8] sm:$0xff]
    %v2076 = vld [vmem:[%s9 + $0x10] sm:$0xff]
    %v2077 = vld [vmem:[%s9 + $0x18] sm:$0xff]
    %v2078 = vld [vmem:[%s9 + $0x20] sm:$0xff]
    %v2079 = vld [vmem:[%s9 + $0x28] sm:$0xff]
    %v2080 = vld [vmem:[%s9 + $0x30] sm:$0xff]
    %v2081 = vld [vmem:[%s9 + $0x38] sm:$0xff]
    %v2082 = vld [vmem:[%s10] sm:$0x1]
    %v2084 = vperm.slane %v2082, 0
    %v2087 = vsel %vm231, %v2073, 0
    %2089 = vmatpush.msra.mxu0 0.0
    %2090 = vmatpush.msra.mxu0 0.0
    %2091 = vmatpush.msra.mxu0 0.0
    %2092 = vmatpush.msra.mxu0 0.0
    %2093 = vmatpush.msra.mxu0 0.0
    %2094 = vmatpush.msra.mxu0 0.0
    %2095 = vmatpush.msra.mxu0 0.0
    %2096 = vmatpush.msra.mxu0 0.0
    %2097 = vmatpush.msra.mxu0 %v2081
    %2098 = vmatpush.msra.mxu0 %v2080
    %2099 = vmatpush.msra.mxu0 %v2079
    %2100 = vmatpush.msra.mxu0 %v2078
    %2101 = vmatpush.msra.mxu0 %v2077
    %2102 = vmatpush.msra.mxu0 %v2076
    %2103 = vmatpush.msra.mxu0 %v2075
    %2104 = vmatpush.msra.mxu0 %v2074
    %2105 = vmatmul.f32.gmra.mxu0 %v2087
    %v2106 = vpop.f32.mrf.mxu0
    %v2107 = vadd.f32 %v2084, %v2106
    %2108 = vdwg.mxu0
    %vm2109 = vcmask 39936
    %2110 = vst.msk [vmem:[%s11] sm:$0xff] %vm2109, %v2107
    // Predicated region
    $region50: #{attention_model_forward.1} parent=1 // pred_check
      _
    $region51: #{attention_model_forward.1} parent=1 // pred_check_branch
      %2112 = sbr.rel (0) target = $region53
    $region52: #{attention_model_forward.1} parent=1 // pred_region
      _
    $region53: #{attention_model_forward.1} parent=1 // pred_fallthru
      _
    // Predicated region
    $region54: #{attention_model_forward.1} parent=1 // pred_check
      _
    $region55: #{attention_model_forward.1} parent=1 // pred_check_branch
      %2114 = sbr.rel (0) target = $region57
    $region56: #{attention_model_forward.1} parent=1 // pred_region
      _
    $region57: #{attention_model_forward.1} parent=1 // pred_fallthru
      _
    %2115 = vsyncpa [#allocation6], 1

</llo_original>
